<compile_context>
chip_gen: v5e
topology: v5e:2x2
jax: 0.10.0
libtpu: 0.0.40
codegen_flags: <defaults>
</compile_context>

<pallas_src>
import math
import functools

import jax
import jax.numpy as jnp
import numpy as np
from jax import lax
from jax.experimental import pallas as pl
from jax.experimental.pallas import tpu as pltpu

LN_EPS = 1e-5


def _layer_norm(z, gamma, beta):
    mu = jnp.mean(z, axis=-1, keepdims=True)
    var = jnp.mean((z - mu) ** 2, axis=-1, keepdims=True)
    return (z - mu) * lax.rsqrt(var + LN_EPS) * gamma + beta


def temporal_attention_kernel(
    x_ref,                      # (R, H) where R = batch_block * seq_len
    wq_ref, bq_ref,             # (H, H) in mm_dtype, (1, H) f32
    wk_ref, bk_ref,
    wv_ref, bv_ref,
    wo_ref, bo_ref,
    g1_ref, b1_ref,             # layer_norm1 gamma/beta (1, H) f32
    g2_ref, b2_ref,             # layer_norm2 gamma/beta (1, H) f32
    o_ref,                      # (R, H)
    *, num_heads: int, head_dim: int, seq_len: int, batch_block: int,
    mm_dtype, approx_recip: bool,
):
    hidden = num_heads * head_dim
    x = x_ref[...].astype(jnp.float32)             # (R, H) residual / identity

    # --- pre-norm (f32 elementwise math) ---
    xn = _layer_norm(x, g1_ref[0], b1_ref[0])

    # --- Q / K / V projections on the whole (R, H) slab (MXU, f32 accumulate) ---
    xm = xn.astype(mm_dtype)
    q = jnp.dot(xm, wq_ref[...], preferred_element_type=jnp.float32) + bq_ref[0]
    k = jnp.dot(xm, wk_ref[...], preferred_element_type=jnp.float32) + bk_ref[0]
    v = jnp.dot(xm, wv_ref[...], preferred_element_type=jnp.float32) + bv_ref[0]

    # Fold 1/sqrt(head_dim) into q once (single (R,H) VPU mul) instead of
    # scaling every (S,S) score tile.
    q = q * (1.0 / math.sqrt(head_dim))

    qm = q.astype(mm_dtype)
    km = k.astype(mm_dtype)
    vm = v.astype(mm_dtype)
    wo = wo_ref[...]                               # (H, H) mm_dtype, loaded once

    dn = (((1,), (1,)), ((), ()))                  # contract last dims of q, k

    proj_rows = []
    for b in range(batch_block):                   # static unroll over batch rows
        r0 = b * seq_len
        qb = qm[r0:r0 + seq_len, :]                # (S, H) static slices
        kb = km[r0:r0 + seq_len, :]
        vb = vm[r0:r0 + seq_len, :]

        proj_b = jnp.zeros((seq_len, hidden), jnp.float32)
        for h in range(num_heads):                 # static unroll over heads
            lo = h * head_dim
            qh = qb[:, lo:lo + head_dim]           # (S, hd)
            kh = kb[:, lo:lo + head_dim]
            vh = vb[:, lo:lo + head_dim]

            # (S, S) scores without materializing kh.T
            s = lax.dot_general(qh, kh, dn, preferred_element_type=jnp.float32)
            s = s - jnp.max(s, axis=-1, keepdims=True)
            p = jnp.exp(s)
            denom = jnp.sum(p, axis=-1, keepdims=True)
            if approx_recip:
                p = p * pl.reciprocal(denom, approx=True)   # EUP vrcp
            else:
                p = p / denom                               # exact-math path

            ctx_h = jnp.dot(p.astype(mm_dtype), vh,
                            preferred_element_type=jnp.float32)        # (S, hd)
            # Accumulate output projection per head: no lane-axis concat.
            proj_b = proj_b + jnp.dot(ctx_h.astype(mm_dtype),
                                      wo[lo:lo + head_dim, :],
                                      preferred_element_type=jnp.float32)
        proj_rows.append(proj_b)

    proj = proj_rows[0] if batch_block == 1 else jnp.concatenate(proj_rows, axis=0)
    proj = proj + bo_ref[0]

    # --- residual + post-norm ---
    out = _layer_norm(proj + x, g2_ref[0], b2_ref[0])
    o_ref[...] = out.astype(o_ref.dtype)


def temporal_attention(x, params, *, num_heads: int, fast_math: bool = True,
                       batch_block: int | None = None):
    """x: [B, S, H] float32. params: dict of weights (see init_params).

    fast_math=True  -> bf16 MXU operands (f32 accumulation) + approx reciprocal.
    fast_math=False -> exact f32 math (validation path).
    batch_block     -> batch rows per grid step; default: whole batch, 1 step.
    """
    B, S, H = x.shape
    assert H % num_heads == 0
    head_dim = H // num_heads
    if batch_block is None:
        batch_block = B
    assert B % batch_block == 0
    num_blocks = B // batch_block
    rows = batch_block * S

    mm_dtype = jnp.bfloat16 if fast_math else jnp.float32

    # Linear weights pre-transposed to [in, out]; MXU operands in mm_dtype.
    wq = params["wq"].T.astype(mm_dtype)
    wk = params["wk"].T.astype(mm_dtype)
    wv = params["wv"].T.astype(mm_dtype)
    wo = params["wo"].T.astype(mm_dtype)
    # Biases / LN params stay f32 (applied after f32 accumulation / on VPU).
    bq = params["bq"].reshape(1, H).astype(jnp.float32)
    bk = params["bk"].reshape(1, H).astype(jnp.float32)
    bv = params["bv"].reshape(1, H).astype(jnp.float32)
    bo = params["bo"].reshape(1, H).astype(jnp.float32)
    g1 = params["ln1_w"].reshape(1, H).astype(jnp.float32)
    b1 = params["ln1_b"].reshape(1, H).astype(jnp.float32)
    g2 = params["ln2_w"].reshape(1, H).astype(jnp.float32)
    b2 = params["ln2_b"].reshape(1, H).astype(jnp.float32)

    param_args = (wq, bq, wk, bk, wv, bv, wo, bo, g1, b1, g2, b2)

    # Fold batch and sequence: LN + projections see one (rows, H) slab per step.
    x2 = x.reshape(B * S, H)

    def full_spec(arr):
        nd = arr.ndim
        return pl.BlockSpec(arr.shape, lambda i, _nd=nd: (0,) * _nd)

    grid_spec = pltpu.PrefetchScalarGridSpec(
        num_scalar_prefetch=0,
        grid=(num_blocks,),
        in_specs=[pl.BlockSpec((rows, H), lambda i: (i, 0))]
        + [full_spec(p) for p in param_args],
        out_specs=pl.BlockSpec((rows, H), lambda i: (i, 0)),
    )

    kernel = functools.partial(
        temporal_attention_kernel,
        num_heads=num_heads, head_dim=head_dim, seq_len=S,
        batch_block=batch_block, mm_dtype=mm_dtype, approx_recip=fast_math,
    )

    out = pl.pallas_call(
        kernel,
        out_shape=jax.ShapeDtypeStruct((B * S, H), x.dtype),
        grid_spec=grid_spec,
        compiler_params=pltpu.CompilerParams(
            dimension_semantics=("parallel",)),   # independent batch blocks (v7x megacore)
    )(x2, *param_args)
    return out.reshape(B, S, H)


def init_params(key, hidden_dim):
    """Deterministic Xavier-uniform weights + zero biases, LN gamma=1 beta=0."""
    H = hidden_dim
    limit = math.sqrt(6.0 / (H + H))
    keys = jax.random.split(key, 4)

    def xavier(k):
        return jax.random.uniform(k, (H, H), jnp.float32, -limit, limit)

    return {
        "wq": xavier(keys[0]), "bq": jnp.zeros((H,), jnp.float32),
        "wk": xavier(keys[1]), "bk": jnp.zeros((H,), jnp.float32),
        "wv": xavier(keys[2]), "bv": jnp.zeros((H,), jnp.float32),
        "wo": xavier(keys[3]), "bo": jnp.zeros((H,), jnp.float32),
        "ln1_w": jnp.ones((H,), jnp.float32), "ln1_b": jnp.zeros((H,), jnp.float32),
        "ln2_w": jnp.ones((H,), jnp.float32), "ln2_b": jnp.zeros((H,), jnp.float32),
    }


def reference_forward(x, params, *, num_heads):
    """Pure-JAX replica of the PyTorch forward (eval mode) for verification."""
    B, S, H = x.shape
    hd = H // num_heads
    identity = x

    def ln(z, g, b):
        mu = jnp.mean(z, axis=-1, keepdims=True)
        var = jnp.mean((z - mu) ** 2, axis=-1, keepdims=True)
        return (z - mu) / jnp.sqrt(var + LN_EPS) * g + b

    xn = ln(x, params["ln1_w"], params["ln1_b"])
    q = xn @ params["wq"].T + params["bq"]
    k = xn @ params["wk"].T + params["bk"]
    v = xn @ params["wv"].T + params["bv"]

    q = q.reshape(B, S, num_heads, hd).transpose(0, 2, 1, 3)
    k = k.reshape(B, S, num_heads, hd).transpose(0, 2, 1, 3)
    v = v.reshape(B, S, num_heads, hd).transpose(0, 2, 1, 3)

    scores = jnp.einsum("bhqd,bhkd->bhqk", q, k) / math.sqrt(hd)
    attn = jax.nn.softmax(scores, axis=-1)
    ctx = jnp.einsum("bhqk,bhkd->bhqd", attn, v)
    ctx = ctx.transpose(0, 2, 1, 3).reshape(B, S, H)
    ctx = ctx @ params["wo"].T + params["bo"]
    out = ctx + identity
    return ln(out, params["ln2_w"], params["ln2_b"])


if __name__ == "__main__":
    # Small shapes consistent with the module: [batch, seq_len, hidden_dim]
    B, S, H = 2, 8, 32
    NUM_HEADS = 4  # head_dim = 8

    key = jax.random.PRNGKey(0)
    kx, kp = jax.random.split(key)
    x = jax.random.normal(kx, (B, S, H), jnp.float32)
    params = init_params(kp, H)

    ref = reference_forward(x, params, num_heads=NUM_HEADS)

    # Exact-math path (f32 MXU operands, exact divide): validates semantics.
    out_exact = jax.block_until_ready(
        temporal_attention(x, params, num_heads=NUM_HEADS, fast_math=False))
    np.testing.assert_allclose(np.asarray(out_exact), np.asarray(ref),
                               rtol=1e-4, atol=1e-4)

    # Fast path (default: bf16 MXU operands + approx reciprocal): relaxed tol.
    out_fast = jax.block_until_ready(
        temporal_attention(x, params, num_heads=NUM_HEADS, fast_math=True))
    np.testing.assert_allclose(np.asarray(out_fast), np.asarray(ref),
                               rtol=5e-2, atol=5e-2)

    print("KERNEL_OK")
</pallas_src>

<mosaic_0001>
module attributes {stable_mosaic.version = 11 : i64} {
  func.func @temporal_attention_kernel(%arg0: i32, %arg1: memref<16x32xf32, #tpu.memory_space<vmem>>, %arg2: memref<32x32xf32, #tpu.memory_space<vmem>>, %arg3: memref<1x32xf32, #tpu.memory_space<vmem>>, %arg4: memref<32x32xf32, #tpu.memory_space<vmem>>, %arg5: memref<1x32xf32, #tpu.memory_space<vmem>>, %arg6: memref<32x32xf32, #tpu.memory_space<vmem>>, %arg7: memref<1x32xf32, #tpu.memory_space<vmem>>, %arg8: memref<32x32xf32, #tpu.memory_space<vmem>>, %arg9: memref<1x32xf32, #tpu.memory_space<vmem>>, %arg10: memref<1x32xf32, #tpu.memory_space<vmem>>, %arg11: memref<1x32xf32, #tpu.memory_space<vmem>>, %arg12: memref<1x32xf32, #tpu.memory_space<vmem>>, %arg13: memref<1x32xf32, #tpu.memory_space<vmem>>, %arg14: memref<16x32xf32, #tpu.memory_space<vmem>>) attributes {dimension_semantics = [#tpu.dimension_semantics<parallel>], iteration_bounds = array<i64: 1>, scalar_prefetch = 0 : i64, scratch_operands = 0 : i64, tpu.core_type = #tpu.core_type<tc>, window_params = [{transform_indices = @transform_0, window_bounds = array<i64: 16, 32>}, {pipeline_mode = #tpu.pipeline_mode<synchronous>, transform_indices = @transform_1, window_bounds = array<i64: 32, 32>}, {pipeline_mode = #tpu.pipeline_mode<synchronous>, transform_indices = @transform_2, window_bounds = array<i64: 1, 32>}, {pipeline_mode = #tpu.pipeline_mode<synchronous>, transform_indices = @transform_3, window_bounds = array<i64: 32, 32>}, {pipeline_mode = #tpu.pipeline_mode<synchronous>, transform_indices = @transform_4, window_bounds = array<i64: 1, 32>}, {pipeline_mode = #tpu.pipeline_mode<synchronous>, transform_indices = @transform_5, window_bounds = array<i64: 32, 32>}, {pipeline_mode = #tpu.pipeline_mode<synchronous>, transform_indices = @transform_6, window_bounds = array<i64: 1, 32>}, {pipeline_mode = #tpu.pipeline_mode<synchronous>, transform_indices = @transform_7, window_bounds = array<i64: 32, 32>}, {pipeline_mode = #tpu.pipeline_mode<synchronous>, transform_indices = @transform_8, window_bounds = array<i64: 1, 32>}, {pipeline_mode = #tpu.pipeline_mode<synchronous>, transform_indices = @transform_9, window_bounds = array<i64: 1, 32>}, {pipeline_mode = #tpu.pipeline_mode<synchronous>, transform_indices = @transform_10, window_bounds = array<i64: 1, 32>}, {pipeline_mode = #tpu.pipeline_mode<synchronous>, transform_indices = @transform_11, window_bounds = array<i64: 1, 32>}, {pipeline_mode = #tpu.pipeline_mode<synchronous>, transform_indices = @transform_12, window_bounds = array<i64: 1, 32>}, {transform_indices = @transform_13, window_bounds = array<i64: 16, 32>}]} {
    %c0 = arith.constant 0 : index
    %c0_0 = arith.constant 0 : index
    %0 = vector.load %arg1[%c0, %c0_0] : memref<16x32xf32, #tpu.memory_space<vmem>>, vector<16x32xf32>
    %c0_1 = arith.constant 0 : index
    %c0_2 = arith.constant 0 : index
    %1 = vector.load %arg10[%c0_1, %c0_2] : memref<1x32xf32, #tpu.memory_space<vmem>>, vector<1x32xf32>
    %2 = vector.shape_cast %1 : vector<1x32xf32> to vector<32xf32>
    %c0_3 = arith.constant 0 : index
    %c0_4 = arith.constant 0 : index
    %3 = vector.load %arg11[%c0_3, %c0_4] : memref<1x32xf32, #tpu.memory_space<vmem>>, vector<1x32xf32>
    %4 = vector.shape_cast %3 : vector<1x32xf32> to vector<32xf32>
    %cst = arith.constant dense<0.000000e+00> : vector<16xf32>
    %5 = vector.multi_reduction <add>, %0, %cst [1] : vector<16x32xf32> to vector<16xf32>
    %6 = vector.shape_cast %5 : vector<16xf32> to vector<16x1xf32>
    %cst_5 = arith.constant 3.200000e+01 : f32
    %7 = vector.broadcast %cst_5 : f32 to vector<16x1xf32>
    %8 = arith.divf %6, %7 : vector<16x1xf32>
    %9 = vector.broadcast %8 : vector<16x1xf32> to vector<16x32xf32>
    %10 = arith.subf %0, %9 : vector<16x32xf32>
    %11 = arith.mulf %10, %10 : vector<16x32xf32>
    %cst_6 = arith.constant dense<0.000000e+00> : vector<16xf32>
    %12 = vector.multi_reduction <add>, %11, %cst_6 [1] : vector<16x32xf32> to vector<16xf32>
    %13 = vector.shape_cast %12 : vector<16xf32> to vector<16x1xf32>
    %cst_7 = arith.constant 3.200000e+01 : f32
    %14 = vector.broadcast %cst_7 : f32 to vector<16x1xf32>
    %15 = arith.divf %13, %14 : vector<16x1xf32>
    %16 = vector.broadcast %8 : vector<16x1xf32> to vector<16x32xf32>
    %17 = arith.subf %0, %16 : vector<16x32xf32>
    %cst_8 = arith.constant 9.99999974E-6 : f32
    %18 = vector.broadcast %cst_8 : f32 to vector<16x1xf32>
    %19 = arith.addf %15, %18 : vector<16x1xf32>
    %20 = math.rsqrt %19 : vector<16x1xf32>
    %21 = vector.broadcast %20 : vector<16x1xf32> to vector<16x32xf32>
    %22 = arith.mulf %17, %21 : vector<16x32xf32>
    %23 = vector.shape_cast %2 : vector<32xf32> to vector<1x32xf32>
    %24 = vector.broadcast %23 : vector<1x32xf32> to vector<16x32xf32>
    %25 = arith.mulf %22, %24 : vector<16x32xf32>
    %26 = vector.shape_cast %4 : vector<32xf32> to vector<1x32xf32>
    %27 = vector.broadcast %26 : vector<1x32xf32> to vector<16x32xf32>
    %28 = arith.addf %25, %27 : vector<16x32xf32>
    %c0_9 = arith.constant 0 : index
    %c0_10 = arith.constant 0 : index
    %29 = vector.load %arg2[%c0_9, %c0_10] : memref<32x32xf32, #tpu.memory_space<vmem>>, vector<32x32xf32>
    %cst_11 = arith.constant dense<0.000000e+00> : vector<16x32xf32>
    %30 = tpu.matmul %28, %29, %cst_11 {dimension_numbers = #tpu.dot_dimension_numbers<[1], [0], [0], [1], [0, 0, 1, 1], [], []>} : vector<16x32xf32>, vector<32x32xf32>, vector<16x32xf32> -> vector<16x32xf32>
    %c0_12 = arith.constant 0 : index
    %c0_13 = arith.constant 0 : index
    %31 = vector.load %arg3[%c0_12, %c0_13] : memref<1x32xf32, #tpu.memory_space<vmem>>, vector<1x32xf32>
    %32 = vector.shape_cast %31 : vector<1x32xf32> to vector<32xf32>
    %33 = vector.shape_cast %32 : vector<32xf32> to vector<1x32xf32>
    %34 = vector.broadcast %33 : vector<1x32xf32> to vector<16x32xf32>
    %35 = arith.addf %30, %34 : vector<16x32xf32>
    %c0_14 = arith.constant 0 : index
    %c0_15 = arith.constant 0 : index
    %36 = vector.load %arg4[%c0_14, %c0_15] : memref<32x32xf32, #tpu.memory_space<vmem>>, vector<32x32xf32>
    %cst_16 = arith.constant dense<0.000000e+00> : vector<16x32xf32>
    %37 = tpu.matmul %28, %36, %cst_16 {dimension_numbers = #tpu.dot_dimension_numbers<[1], [0], [0], [1], [0, 0, 1, 1], [], []>} : vector<16x32xf32>, vector<32x32xf32>, vector<16x32xf32> -> vector<16x32xf32>
    %c0_17 = arith.constant 0 : index
    %c0_18 = arith.constant 0 : index
    %38 = vector.load %arg5[%c0_17, %c0_18] : memref<1x32xf32, #tpu.memory_space<vmem>>, vector<1x32xf32>
    %39 = vector.shape_cast %38 : vector<1x32xf32> to vector<32xf32>
    %40 = vector.shape_cast %39 : vector<32xf32> to vector<1x32xf32>
    %41 = vector.broadcast %40 : vector<1x32xf32> to vector<16x32xf32>
    %42 = arith.addf %37, %41 : vector<16x32xf32>
    %c0_19 = arith.constant 0 : index
    %c0_20 = arith.constant 0 : index
    %43 = vector.load %arg6[%c0_19, %c0_20] : memref<32x32xf32, #tpu.memory_space<vmem>>, vector<32x32xf32>
    %cst_21 = arith.constant dense<0.000000e+00> : vector<16x32xf32>
    %44 = tpu.matmul %28, %43, %cst_21 {dimension_numbers = #tpu.dot_dimension_numbers<[1], [0], [0], [1], [0, 0, 1, 1], [], []>} : vector<16x32xf32>, vector<32x32xf32>, vector<16x32xf32> -> vector<16x32xf32>
    %c0_22 = arith.constant 0 : index
    %c0_23 = arith.constant 0 : index
    %45 = vector.load %arg7[%c0_22, %c0_23] : memref<1x32xf32, #tpu.memory_space<vmem>>, vector<1x32xf32>
    %46 = vector.shape_cast %45 : vector<1x32xf32> to vector<32xf32>
    %47 = vector.shape_cast %46 : vector<32xf32> to vector<1x32xf32>
    %48 = vector.broadcast %47 : vector<1x32xf32> to vector<16x32xf32>
    %49 = arith.addf %44, %48 : vector<16x32xf32>
    %cst_24 = arith.constant 0.353553385 : f32
    %50 = vector.broadcast %cst_24 : f32 to vector<16x32xf32>
    %51 = arith.mulf %35, %50 : vector<16x32xf32>
    %c0_25 = arith.constant 0 : index
    %c0_26 = arith.constant 0 : index
    %52 = vector.load %arg8[%c0_25, %c0_26] : memref<32x32xf32, #tpu.memory_space<vmem>>, vector<32x32xf32>
    %53 = vector.extract_strided_slice %51 {offsets = [0, 0], sizes = [8, 32], strides = [1, 1]} : vector<16x32xf32> to vector<8x32xf32>
    %54 = vector.extract_strided_slice %42 {offsets = [0, 0], sizes = [8, 32], strides = [1, 1]} : vector<16x32xf32> to vector<8x32xf32>
    %55 = vector.extract_strided_slice %49 {offsets = [0, 0], sizes = [8, 32], strides = [1, 1]} : vector<16x32xf32> to vector<8x32xf32>
    %cst_27 = arith.constant 0.000000e+00 : f32
    %56 = vector.broadcast %cst_27 : f32 to vector<8x32xf32>
    %57 = vector.extract_strided_slice %53 {offsets = [0, 0], sizes = [8, 8], strides = [1, 1]} : vector<8x32xf32> to vector<8x8xf32>
    %58 = vector.extract_strided_slice %54 {offsets = [0, 0], sizes = [8, 8], strides = [1, 1]} : vector<8x32xf32> to vector<8x8xf32>
    %59 = vector.extract_strided_slice %55 {offsets = [0, 0], sizes = [8, 8], strides = [1, 1]} : vector<8x32xf32> to vector<8x8xf32>
    %cst_28 = arith.constant dense<0.000000e+00> : vector<8x8xf32>
    %60 = tpu.matmul %57, %58, %cst_28 {dimension_numbers = #tpu.dot_dimension_numbers<[1], [1], [0], [0], [0, 0, 1, 0], [], []>} : vector<8x8xf32>, vector<8x8xf32>, vector<8x8xf32> -> vector<8x8xf32>
    %cst_29 = arith.constant dense<0xFF800000> : vector<8xf32>
    %61 = vector.multi_reduction <maximumf>, %60, %cst_29 [1] : vector<8x8xf32> to vector<8xf32>
    %62 = vector.shape_cast %61 : vector<8xf32> to vector<8x1xf32>
    %63 = vector.broadcast %62 : vector<8x1xf32> to vector<8x8xf32>
    %64 = arith.subf %60, %63 : vector<8x8xf32>
    %65 = math.exp %64 : vector<8x8xf32>
    %cst_30 = arith.constant dense<0.000000e+00> : vector<8xf32>
    %66 = vector.multi_reduction <add>, %65, %cst_30 [1] : vector<8x8xf32> to vector<8xf32>
    %67 = vector.shape_cast %66 : vector<8xf32> to vector<8x1xf32>
    %68 = vector.broadcast %67 : vector<8x1xf32> to vector<8x8xf32>
    %69 = arith.divf %65, %68 : vector<8x8xf32>
    %cst_31 = arith.constant dense<0.000000e+00> : vector<8x8xf32>
    %70 = tpu.matmul %69, %59, %cst_31 {dimension_numbers = #tpu.dot_dimension_numbers<[1], [0], [0], [1], [0, 0, 1, 1], [], []>} : vector<8x8xf32>, vector<8x8xf32>, vector<8x8xf32> -> vector<8x8xf32>
    %71 = vector.extract_strided_slice %52 {offsets = [0, 0], sizes = [8, 32], strides = [1, 1]} : vector<32x32xf32> to vector<8x32xf32>
    %cst_32 = arith.constant dense<0.000000e+00> : vector<8x32xf32>
    %72 = tpu.matmul %70, %71, %cst_32 {dimension_numbers = #tpu.dot_dimension_numbers<[1], [0], [0], [1], [0, 0, 1, 1], [], []>} : vector<8x8xf32>, vector<8x32xf32>, vector<8x32xf32> -> vector<8x32xf32>
    %73 = arith.addf %56, %72 : vector<8x32xf32>
    %74 = vector.extract_strided_slice %53 {offsets = [0, 8], sizes = [8, 8], strides = [1, 1]} : vector<8x32xf32> to vector<8x8xf32>
    %75 = vector.extract_strided_slice %54 {offsets = [0, 8], sizes = [8, 8], strides = [1, 1]} : vector<8x32xf32> to vector<8x8xf32>
    %76 = vector.extract_strided_slice %55 {offsets = [0, 8], sizes = [8, 8], strides = [1, 1]} : vector<8x32xf32> to vector<8x8xf32>
    %cst_33 = arith.constant dense<0.000000e+00> : vector<8x8xf32>
    %77 = tpu.matmul %74, %75, %cst_33 {dimension_numbers = #tpu.dot_dimension_numbers<[1], [1], [0], [0], [0, 0, 1, 0], [], []>} : vector<8x8xf32>, vector<8x8xf32>, vector<8x8xf32> -> vector<8x8xf32>
    %cst_34 = arith.constant dense<0xFF800000> : vector<8xf32>
    %78 = vector.multi_reduction <maximumf>, %77, %cst_34 [1] : vector<8x8xf32> to vector<8xf32>
    %79 = vector.shape_cast %78 : vector<8xf32> to vector<8x1xf32>
    %80 = vector.broadcast %79 : vector<8x1xf32> to vector<8x8xf32>
    %81 = arith.subf %77, %80 : vector<8x8xf32>
    %82 = math.exp %81 : vector<8x8xf32>
    %cst_35 = arith.constant dense<0.000000e+00> : vector<8xf32>
    %83 = vector.multi_reduction <add>, %82, %cst_35 [1] : vector<8x8xf32> to vector<8xf32>
    %84 = vector.shape_cast %83 : vector<8xf32> to vector<8x1xf32>
    %85 = vector.broadcast %84 : vector<8x1xf32> to vector<8x8xf32>
    %86 = arith.divf %82, %85 : vector<8x8xf32>
    %cst_36 = arith.constant dense<0.000000e+00> : vector<8x8xf32>
    %87 = tpu.matmul %86, %76, %cst_36 {dimension_numbers = #tpu.dot_dimension_numbers<[1], [0], [0], [1], [0, 0, 1, 1], [], []>} : vector<8x8xf32>, vector<8x8xf32>, vector<8x8xf32> -> vector<8x8xf32>
    %88 = vector.extract_strided_slice %52 {offsets = [8, 0], sizes = [8, 32], strides = [1, 1]} : vector<32x32xf32> to vector<8x32xf32>
    %cst_37 = arith.constant dense<0.000000e+00> : vector<8x32xf32>
    %89 = tpu.matmul %87, %88, %cst_37 {dimension_numbers = #tpu.dot_dimension_numbers<[1], [0], [0], [1], [0, 0, 1, 1], [], []>} : vector<8x8xf32>, vector<8x32xf32>, vector<8x32xf32> -> vector<8x32xf32>
    %90 = arith.addf %73, %89 : vector<8x32xf32>
    %91 = vector.extract_strided_slice %53 {offsets = [0, 16], sizes = [8, 8], strides = [1, 1]} : vector<8x32xf32> to vector<8x8xf32>
    %92 = vector.extract_strided_slice %54 {offsets = [0, 16], sizes = [8, 8], strides = [1, 1]} : vector<8x32xf32> to vector<8x8xf32>
    %93 = vector.extract_strided_slice %55 {offsets = [0, 16], sizes = [8, 8], strides = [1, 1]} : vector<8x32xf32> to vector<8x8xf32>
    %cst_38 = arith.constant dense<0.000000e+00> : vector<8x8xf32>
    %94 = tpu.matmul %91, %92, %cst_38 {dimension_numbers = #tpu.dot_dimension_numbers<[1], [1], [0], [0], [0, 0, 1, 0], [], []>} : vector<8x8xf32>, vector<8x8xf32>, vector<8x8xf32> -> vector<8x8xf32>
    %cst_39 = arith.constant dense<0xFF800000> : vector<8xf32>
    %95 = vector.multi_reduction <maximumf>, %94, %cst_39 [1] : vector<8x8xf32> to vector<8xf32>
    %96 = vector.shape_cast %95 : vector<8xf32> to vector<8x1xf32>
    %97 = vector.broadcast %96 : vector<8x1xf32> to vector<8x8xf32>
    %98 = arith.subf %94, %97 : vector<8x8xf32>
    %99 = math.exp %98 : vector<8x8xf32>
    %cst_40 = arith.constant dense<0.000000e+00> : vector<8xf32>
    %100 = vector.multi_reduction <add>, %99, %cst_40 [1] : vector<8x8xf32> to vector<8xf32>
    %101 = vector.shape_cast %100 : vector<8xf32> to vector<8x1xf32>
    %102 = vector.broadcast %101 : vector<8x1xf32> to vector<8x8xf32>
    %103 = arith.divf %99, %102 : vector<8x8xf32>
    %cst_41 = arith.constant dense<0.000000e+00> : vector<8x8xf32>
    %104 = tpu.matmul %103, %93, %cst_41 {dimension_numbers = #tpu.dot_dimension_numbers<[1], [0], [0], [1], [0, 0, 1, 1], [], []>} : vector<8x8xf32>, vector<8x8xf32>, vector<8x8xf32> -> vector<8x8xf32>
    %105 = vector.extract_strided_slice %52 {offsets = [16, 0], sizes = [8, 32], strides = [1, 1]} : vector<32x32xf32> to vector<8x32xf32>
    %cst_42 = arith.constant dense<0.000000e+00> : vector<8x32xf32>
    %106 = tpu.matmul %104, %105, %cst_42 {dimension_numbers = #tpu.dot_dimension_numbers<[1], [0], [0], [1], [0, 0, 1, 1], [], []>} : vector<8x8xf32>, vector<8x32xf32>, vector<8x32xf32> -> vector<8x32xf32>
    %107 = arith.addf %90, %106 : vector<8x32xf32>
    %108 = vector.extract_strided_slice %53 {offsets = [0, 24], sizes = [8, 8], strides = [1, 1]} : vector<8x32xf32> to vector<8x8xf32>
    %109 = vector.extract_strided_slice %54 {offsets = [0, 24], sizes = [8, 8], strides = [1, 1]} : vector<8x32xf32> to vector<8x8xf32>
    %110 = vector.extract_strided_slice %55 {offsets = [0, 24], sizes = [8, 8], strides = [1, 1]} : vector<8x32xf32> to vector<8x8xf32>
    %cst_43 = arith.constant dense<0.000000e+00> : vector<8x8xf32>
    %111 = tpu.matmul %108, %109, %cst_43 {dimension_numbers = #tpu.dot_dimension_numbers<[1], [1], [0], [0], [0, 0, 1, 0], [], []>} : vector<8x8xf32>, vector<8x8xf32>, vector<8x8xf32> -> vector<8x8xf32>
    %cst_44 = arith.constant dense<0xFF800000> : vector<8xf32>
    %112 = vector.multi_reduction <maximumf>, %111, %cst_44 [1] : vector<8x8xf32> to vector<8xf32>
    %113 = vector.shape_cast %112 : vector<8xf32> to vector<8x1xf32>
    %114 = vector.broadcast %113 : vector<8x1xf32> to vector<8x8xf32>
    %115 = arith.subf %111, %114 : vector<8x8xf32>
    %116 = math.exp %115 : vector<8x8xf32>
    %cst_45 = arith.constant dense<0.000000e+00> : vector<8xf32>
    %117 = vector.multi_reduction <add>, %116, %cst_45 [1] : vector<8x8xf32> to vector<8xf32>
    %118 = vector.shape_cast %117 : vector<8xf32> to vector<8x1xf32>
    %119 = vector.broadcast %118 : vector<8x1xf32> to vector<8x8xf32>
    %120 = arith.divf %116, %119 : vector<8x8xf32>
    %cst_46 = arith.constant dense<0.000000e+00> : vector<8x8xf32>
    %121 = tpu.matmul %120, %110, %cst_46 {dimension_numbers = #tpu.dot_dimension_numbers<[1], [0], [0], [1], [0, 0, 1, 1], [], []>} : vector<8x8xf32>, vector<8x8xf32>, vector<8x8xf32> -> vector<8x8xf32>
    %122 = vector.extract_strided_slice %52 {offsets = [24, 0], sizes = [8, 32], strides = [1, 1]} : vector<32x32xf32> to vector<8x32xf32>
    %cst_47 = arith.constant dense<0.000000e+00> : vector<8x32xf32>
    %123 = tpu.matmul %121, %122, %cst_47 {dimension_numbers = #tpu.dot_dimension_numbers<[1], [0], [0], [1], [0, 0, 1, 1], [], []>} : vector<8x8xf32>, vector<8x32xf32>, vector<8x32xf32> -> vector<8x32xf32>
    %124 = arith.addf %107, %123 : vector<8x32xf32>
    %125 = vector.extract_strided_slice %51 {offsets = [8, 0], sizes = [8, 32], strides = [1, 1]} : vector<16x32xf32> to vector<8x32xf32>
    %126 = vector.extract_strided_slice %42 {offsets = [8, 0], sizes = [8, 32], strides = [1, 1]} : vector<16x32xf32> to vector<8x32xf32>
    %127 = vector.extract_strided_slice %49 {offsets = [8, 0], sizes = [8, 32], strides = [1, 1]} : vector<16x32xf32> to vector<8x32xf32>
    %cst_48 = arith.constant 0.000000e+00 : f32
    %128 = vector.broadcast %cst_48 : f32 to vector<8x32xf32>
    %129 = vector.extract_strided_slice %125 {offsets = [0, 0], sizes = [8, 8], strides = [1, 1]} : vector<8x32xf32> to vector<8x8xf32>
    %130 = vector.extract_strided_slice %126 {offsets = [0, 0], sizes = [8, 8], strides = [1, 1]} : vector<8x32xf32> to vector<8x8xf32>
    %131 = vector.extract_strided_slice %127 {offsets = [0, 0], sizes = [8, 8], strides = [1, 1]} : vector<8x32xf32> to vector<8x8xf32>
    %cst_49 = arith.constant dense<0.000000e+00> : vector<8x8xf32>
    %132 = tpu.matmul %129, %130, %cst_49 {dimension_numbers = #tpu.dot_dimension_numbers<[1], [1], [0], [0], [0, 0, 1, 0], [], []>} : vector<8x8xf32>, vector<8x8xf32>, vector<8x8xf32> -> vector<8x8xf32>
    %cst_50 = arith.constant dense<0xFF800000> : vector<8xf32>
    %133 = vector.multi_reduction <maximumf>, %132, %cst_50 [1] : vector<8x8xf32> to vector<8xf32>
    %134 = vector.shape_cast %133 : vector<8xf32> to vector<8x1xf32>
    %135 = vector.broadcast %134 : vector<8x1xf32> to vector<8x8xf32>
    %136 = arith.subf %132, %135 : vector<8x8xf32>
    %137 = math.exp %136 : vector<8x8xf32>
    %cst_51 = arith.constant dense<0.000000e+00> : vector<8xf32>
    %138 = vector.multi_reduction <add>, %137, %cst_51 [1] : vector<8x8xf32> to vector<8xf32>
    %139 = vector.shape_cast %138 : vector<8xf32> to vector<8x1xf32>
    %140 = vector.broadcast %139 : vector<8x1xf32> to vector<8x8xf32>
    %141 = arith.divf %137, %140 : vector<8x8xf32>
    %cst_52 = arith.constant dense<0.000000e+00> : vector<8x8xf32>
    %142 = tpu.matmul %141, %131, %cst_52 {dimension_numbers = #tpu.dot_dimension_numbers<[1], [0], [0], [1], [0, 0, 1, 1], [], []>} : vector<8x8xf32>, vector<8x8xf32>, vector<8x8xf32> -> vector<8x8xf32>
    %143 = vector.extract_strided_slice %52 {offsets = [0, 0], sizes = [8, 32], strides = [1, 1]} : vector<32x32xf32> to vector<8x32xf32>
    %cst_53 = arith.constant dense<0.000000e+00> : vector<8x32xf32>
    %144 = tpu.matmul %142, %143, %cst_53 {dimension_numbers = #tpu.dot_dimension_numbers<[1], [0], [0], [1], [0, 0, 1, 1], [], []>} : vector<8x8xf32>, vector<8x32xf32>, vector<8x32xf32> -> vector<8x32xf32>
    %145 = arith.addf %128, %144 : vector<8x32xf32>
    %146 = vector.extract_strided_slice %125 {offsets = [0, 8], sizes = [8, 8], strides = [1, 1]} : vector<8x32xf32> to vector<8x8xf32>
    %147 = vector.extract_strided_slice %126 {offsets = [0, 8], sizes = [8, 8], strides = [1, 1]} : vector<8x32xf32> to vector<8x8xf32>
    %148 = vector.extract_strided_slice %127 {offsets = [0, 8], sizes = [8, 8], strides = [1, 1]} : vector<8x32xf32> to vector<8x8xf32>
    %cst_54 = arith.constant dense<0.000000e+00> : vector<8x8xf32>
    %149 = tpu.matmul %146, %147, %cst_54 {dimension_numbers = #tpu.dot_dimension_numbers<[1], [1], [0], [0], [0, 0, 1, 0], [], []>} : vector<8x8xf32>, vector<8x8xf32>, vector<8x8xf32> -> vector<8x8xf32>
    %cst_55 = arith.constant dense<0xFF800000> : vector<8xf32>
    %150 = vector.multi_reduction <maximumf>, %149, %cst_55 [1] : vector<8x8xf32> to vector<8xf32>
    %151 = vector.shape_cast %150 : vector<8xf32> to vector<8x1xf32>
    %152 = vector.broadcast %151 : vector<8x1xf32> to vector<8x8xf32>
    %153 = arith.subf %149, %152 : vector<8x8xf32>
    %154 = math.exp %153 : vector<8x8xf32>
    %cst_56 = arith.constant dense<0.000000e+00> : vector<8xf32>
    %155 = vector.multi_reduction <add>, %154, %cst_56 [1] : vector<8x8xf32> to vector<8xf32>
    %156 = vector.shape_cast %155 : vector<8xf32> to vector<8x1xf32>
    %157 = vector.broadcast %156 : vector<8x1xf32> to vector<8x8xf32>
    %158 = arith.divf %154, %157 : vector<8x8xf32>
    %cst_57 = arith.constant dense<0.000000e+00> : vector<8x8xf32>
    %159 = tpu.matmul %158, %148, %cst_57 {dimension_numbers = #tpu.dot_dimension_numbers<[1], [0], [0], [1], [0, 0, 1, 1], [], []>} : vector<8x8xf32>, vector<8x8xf32>, vector<8x8xf32> -> vector<8x8xf32>
    %160 = vector.extract_strided_slice %52 {offsets = [8, 0], sizes = [8, 32], strides = [1, 1]} : vector<32x32xf32> to vector<8x32xf32>
    %cst_58 = arith.constant dense<0.000000e+00> : vector<8x32xf32>
    %161 = tpu.matmul %159, %160, %cst_58 {dimension_numbers = #tpu.dot_dimension_numbers<[1], [0], [0], [1], [0, 0, 1, 1], [], []>} : vector<8x8xf32>, vector<8x32xf32>, vector<8x32xf32> -> vector<8x32xf32>
    %162 = arith.addf %145, %161 : vector<8x32xf32>
    %163 = vector.extract_strided_slice %125 {offsets = [0, 16], sizes = [8, 8], strides = [1, 1]} : vector<8x32xf32> to vector<8x8xf32>
    %164 = vector.extract_strided_slice %126 {offsets = [0, 16], sizes = [8, 8], strides = [1, 1]} : vector<8x32xf32> to vector<8x8xf32>
    %165 = vector.extract_strided_slice %127 {offsets = [0, 16], sizes = [8, 8], strides = [1, 1]} : vector<8x32xf32> to vector<8x8xf32>
    %cst_59 = arith.constant dense<0.000000e+00> : vector<8x8xf32>
    %166 = tpu.matmul %163, %164, %cst_59 {dimension_numbers = #tpu.dot_dimension_numbers<[1], [1], [0], [0], [0, 0, 1, 0], [], []>} : vector<8x8xf32>, vector<8x8xf32>, vector<8x8xf32> -> vector<8x8xf32>
    %cst_60 = arith.constant dense<0xFF800000> : vector<8xf32>
    %167 = vector.multi_reduction <maximumf>, %166, %cst_60 [1] : vector<8x8xf32> to vector<8xf32>
    %168 = vector.shape_cast %167 : vector<8xf32> to vector<8x1xf32>
    %169 = vector.broadcast %168 : vector<8x1xf32> to vector<8x8xf32>
    %170 = arith.subf %166, %169 : vector<8x8xf32>
    %171 = math.exp %170 : vector<8x8xf32>
    %cst_61 = arith.constant dense<0.000000e+00> : vector<8xf32>
    %172 = vector.multi_reduction <add>, %171, %cst_61 [1] : vector<8x8xf32> to vector<8xf32>
    %173 = vector.shape_cast %172 : vector<8xf32> to vector<8x1xf32>
    %174 = vector.broadcast %173 : vector<8x1xf32> to vector<8x8xf32>
    %175 = arith.divf %171, %174 : vector<8x8xf32>
    %cst_62 = arith.constant dense<0.000000e+00> : vector<8x8xf32>
    %176 = tpu.matmul %175, %165, %cst_62 {dimension_numbers = #tpu.dot_dimension_numbers<[1], [0], [0], [1], [0, 0, 1, 1], [], []>} : vector<8x8xf32>, vector<8x8xf32>, vector<8x8xf32> -> vector<8x8xf32>
    %177 = vector.extract_strided_slice %52 {offsets = [16, 0], sizes = [8, 32], strides = [1, 1]} : vector<32x32xf32> to vector<8x32xf32>
    %cst_63 = arith.constant dense<0.000000e+00> : vector<8x32xf32>
    %178 = tpu.matmul %176, %177, %cst_63 {dimension_numbers = #tpu.dot_dimension_numbers<[1], [0], [0], [1], [0, 0, 1, 1], [], []>} : vector<8x8xf32>, vector<8x32xf32>, vector<8x32xf32> -> vector<8x32xf32>
    %179 = arith.addf %162, %178 : vector<8x32xf32>
    %180 = vector.extract_strided_slice %125 {offsets = [0, 24], sizes = [8, 8], strides = [1, 1]} : vector<8x32xf32> to vector<8x8xf32>
    %181 = vector.extract_strided_slice %126 {offsets = [0, 24], sizes = [8, 8], strides = [1, 1]} : vector<8x32xf32> to vector<8x8xf32>
    %182 = vector.extract_strided_slice %127 {offsets = [0, 24], sizes = [8, 8], strides = [1, 1]} : vector<8x32xf32> to vector<8x8xf32>
    %cst_64 = arith.constant dense<0.000000e+00> : vector<8x8xf32>
    %183 = tpu.matmul %180, %181, %cst_64 {dimension_numbers = #tpu.dot_dimension_numbers<[1], [1], [0], [0], [0, 0, 1, 0], [], []>} : vector<8x8xf32>, vector<8x8xf32>, vector<8x8xf32> -> vector<8x8xf32>
    %cst_65 = arith.constant dense<0xFF800000> : vector<8xf32>
    %184 = vector.multi_reduction <maximumf>, %183, %cst_65 [1] : vector<8x8xf32> to vector<8xf32>
    %185 = vector.shape_cast %184 : vector<8xf32> to vector<8x1xf32>
    %186 = vector.broadcast %185 : vector<8x1xf32> to vector<8x8xf32>
    %187 = arith.subf %183, %186 : vector<8x8xf32>
    %188 = math.exp %187 : vector<8x8xf32>
    %cst_66 = arith.constant dense<0.000000e+00> : vector<8xf32>
    %189 = vector.multi_reduction <add>, %188, %cst_66 [1] : vector<8x8xf32> to vector<8xf32>
    %190 = vector.shape_cast %189 : vector<8xf32> to vector<8x1xf32>
    %191 = vector.broadcast %190 : vector<8x1xf32> to vector<8x8xf32>
    %192 = arith.divf %188, %191 : vector<8x8xf32>
    %cst_67 = arith.constant dense<0.000000e+00> : vector<8x8xf32>
    %193 = tpu.matmul %192, %182, %cst_67 {dimension_numbers = #tpu.dot_dimension_numbers<[1], [0], [0], [1], [0, 0, 1, 1], [], []>} : vector<8x8xf32>, vector<8x8xf32>, vector<8x8xf32> -> vector<8x8xf32>
    %194 = vector.extract_strided_slice %52 {offsets = [24, 0], sizes = [8, 32], strides = [1, 1]} : vector<32x32xf32> to vector<8x32xf32>
    %cst_68 = arith.constant dense<0.000000e+00> : vector<8x32xf32>
    %195 = tpu.matmul %193, %194, %cst_68 {dimension_numbers = #tpu.dot_dimension_numbers<[1], [0], [0], [1], [0, 0, 1, 1], [], []>} : vector<8x8xf32>, vector<8x32xf32>, vector<8x32xf32> -> vector<8x32xf32>
    %196 = arith.addf %179, %195 : vector<8x32xf32>
    %197 = tpu.concatenate %124, %196 in 0 : vector<8x32xf32>, vector<8x32xf32> -> vector<16x32xf32>
    %c0_69 = arith.constant 0 : index
    %c0_70 = arith.constant 0 : index
    %198 = vector.load %arg9[%c0_69, %c0_70] : memref<1x32xf32, #tpu.memory_space<vmem>>, vector<1x32xf32>
    %199 = vector.shape_cast %198 : vector<1x32xf32> to vector<32xf32>
    %200 = vector.shape_cast %199 : vector<32xf32> to vector<1x32xf32>
    %201 = vector.broadcast %200 : vector<1x32xf32> to vector<16x32xf32>
    %202 = arith.addf %197, %201 : vector<16x32xf32>
    %203 = arith.addf %202, %0 : vector<16x32xf32>
    %c0_71 = arith.constant 0 : index
    %c0_72 = arith.constant 0 : index
    %204 = vector.load %arg12[%c0_71, %c0_72] : memref<1x32xf32, #tpu.memory_space<vmem>>, vector<1x32xf32>
    %205 = vector.shape_cast %204 : vector<1x32xf32> to vector<32xf32>
    %c0_73 = arith.constant 0 : index
    %c0_74 = arith.constant 0 : index
    %206 = vector.load %arg13[%c0_73, %c0_74] : memref<1x32xf32, #tpu.memory_space<vmem>>, vector<1x32xf32>
    %207 = vector.shape_cast %206 : vector<1x32xf32> to vector<32xf32>
    %cst_75 = arith.constant dense<0.000000e+00> : vector<16xf32>
    %208 = vector.multi_reduction <add>, %203, %cst_75 [1] : vector<16x32xf32> to vector<16xf32>
    %209 = vector.shape_cast %208 : vector<16xf32> to vector<16x1xf32>
    %cst_76 = arith.constant 3.200000e+01 : f32
    %210 = vector.broadcast %cst_76 : f32 to vector<16x1xf32>
    %211 = arith.divf %209, %210 : vector<16x1xf32>
    %212 = vector.broadcast %211 : vector<16x1xf32> to vector<16x32xf32>
    %213 = arith.subf %203, %212 : vector<16x32xf32>
    %214 = arith.mulf %213, %213 : vector<16x32xf32>
    %cst_77 = arith.constant dense<0.000000e+00> : vector<16xf32>
    %215 = vector.multi_reduction <add>, %214, %cst_77 [1] : vector<16x32xf32> to vector<16xf32>
    %216 = vector.shape_cast %215 : vector<16xf32> to vector<16x1xf32>
    %cst_78 = arith.constant 3.200000e+01 : f32
    %217 = vector.broadcast %cst_78 : f32 to vector<16x1xf32>
    %218 = arith.divf %216, %217 : vector<16x1xf32>
    %219 = vector.broadcast %211 : vector<16x1xf32> to vector<16x32xf32>
    %220 = arith.subf %203, %219 : vector<16x32xf32>
    %cst_79 = arith.constant 9.99999974E-6 : f32
    %221 = vector.broadcast %cst_79 : f32 to vector<16x1xf32>
    %222 = arith.addf %218, %221 : vector<16x1xf32>
    %223 = math.rsqrt %222 : vector<16x1xf32>
    %224 = vector.broadcast %223 : vector<16x1xf32> to vector<16x32xf32>
    %225 = arith.mulf %220, %224 : vector<16x32xf32>
    %226 = vector.shape_cast %205 : vector<32xf32> to vector<1x32xf32>
    %227 = vector.broadcast %226 : vector<1x32xf32> to vector<16x32xf32>
    %228 = arith.mulf %225, %227 : vector<16x32xf32>
    %229 = vector.shape_cast %207 : vector<32xf32> to vector<1x32xf32>
    %230 = vector.broadcast %229 : vector<1x32xf32> to vector<16x32xf32>
    %231 = arith.addf %228, %230 : vector<16x32xf32>
    %c0_80 = arith.constant 0 : index
    %c0_81 = arith.constant 0 : index
    %232 = vector.load %arg14[%c0_80, %c0_81] : memref<16x32xf32, #tpu.memory_space<vmem>>, vector<16x32xf32>
    tpu.vector_store %arg14[%c0_80, %c0_81], %231 {strides = array<i32>} : memref<16x32xf32, #tpu.memory_space<vmem>>, vector<16x32xf32>,
    return
  }
  func.func @transform_0(%arg0: i32) -> (i32, i32) {
    %c0_i32 = arith.constant 0 : i32
    %c0_i32_0 = arith.constant 0 : i32
    return %arg0, %c0_i32 : i32, i32
  }
  func.func @transform_1(%arg0: i32) -> (i32, i32) {
    %c0_i32 = arith.constant 0 : i32
    %c0_i32_0 = arith.constant 0 : i32
    %c0_i32_1 = arith.constant 0 : i32
    return %c0_i32, %c0_i32_0 : i32, i32
  }
  func.func @transform_2(%arg0: i32) -> (i32, i32) {
    %c0_i32 = arith.constant 0 : i32
    %c0_i32_0 = arith.constant 0 : i32
    %c0_i32_1 = arith.constant 0 : i32
    return %c0_i32, %c0_i32_0 : i32, i32
  }
  func.func @transform_3(%arg0: i32) -> (i32, i32) {
    %c0_i32 = arith.constant 0 : i32
    %c0_i32_0 = arith.constant 0 : i32
    %c0_i32_1 = arith.constant 0 : i32
    return %c0_i32, %c0_i32_0 : i32, i32
  }
  func.func @transform_4(%arg0: i32) -> (i32, i32) {
    %c0_i32 = arith.constant 0 : i32
    %c0_i32_0 = arith.constant 0 : i32
    %c0_i32_1 = arith.constant 0 : i32
    return %c0_i32, %c0_i32_0 : i32, i32
  }
  func.func @transform_5(%arg0: i32) -> (i32, i32) {
    %c0_i32 = arith.constant 0 : i32
    %c0_i32_0 = arith.constant 0 : i32
    %c0_i32_1 = arith.constant 0 : i32
    return %c0_i32, %c0_i32_0 : i32, i32
  }
  func.func @transform_6(%arg0: i32) -> (i32, i32) {
    %c0_i32 = arith.constant 0 : i32
    %c0_i32_0 = arith.constant 0 : i32
    %c0_i32_1 = arith.constant 0 : i32
    return %c0_i32, %c0_i32_0 : i32, i32
  }
  func.func @transform_7(%arg0: i32) -> (i32, i32) {
    %c0_i32 = arith.constant 0 : i32
    %c0_i32_0 = arith.constant 0 : i32
    %c0_i32_1 = arith.constant 0 : i32
    return %c0_i32, %c0_i32_0 : i32, i32
  }
  func.func @transform_8(%arg0: i32) -> (i32, i32) {
    %c0_i32 = arith.constant 0 : i32
    %c0_i32_0 = arith.constant 0 : i32
    %c0_i32_1 = arith.constant 0 : i32
    return %c0_i32, %c0_i32_0 : i32, i32
  }
  func.func @transform_9(%arg0: i32) -> (i32, i32) {
    %c0_i32 = arith.constant 0 : i32
    %c0_i32_0 = arith.constant 0 : i32
    %c0_i32_1 = arith.constant 0 : i32
    return %c0_i32, %c0_i32_0 : i32, i32
  }
  func.func @transform_10(%arg0: i32) -> (i32, i32) {
    %c0_i32 = arith.constant 0 : i32
    %c0_i32_0 = arith.constant 0 : i32
    %c0_i32_1 = arith.constant 0 : i32
    return %c0_i32, %c0_i32_0 : i32, i32
  }
  func.func @transform_11(%arg0: i32) -> (i32, i32) {
    %c0_i32 = arith.constant 0 : i32
    %c0_i32_0 = arith.constant 0 : i32
    %c0_i32_1 = arith.constant 0 : i32
    return %c0_i32, %c0_i32_0 : i32, i32
  }
  func.func @transform_12(%arg0: i32) -> (i32, i32) {
    %c0_i32 = arith.constant 0 : i32
    %c0_i32_0 = arith.constant 0 : i32
    %c0_i32_1 = arith.constant 0 : i32
    return %c0_i32, %c0_i32_0 : i32, i32
  }
  func.func @transform_13(%arg0: i32) -> (i32, i32) {
    %c0_i32 = arith.constant 0 : i32
    %c0_i32_0 = arith.constant 0 : i32
    return %arg0, %c0_i32 : i32, i32
  }
}

</mosaic_0001>

<llo_original>
// kernel: tpu_custom_call.1
$region0: #{tpu_custom_call.1}
  #allocation0 [shape = 'u32[]', space=smem, size = 0x4, offset = 0x4, fixed_abs, tag = 'smem constant byte address 0x4 - core index']
  #allocation1 [shape = 'u32[72,128]{1,0:T(1,128)}', space=vmem, size = 0x9000, scoped, tag = 'internal scratch']
  %s0 = inlined_call_operand.hbm [shape: f32[16,32], index: 0, kind: input, shape index: {}]
  %s1 = inlined_call_operand.hbm [shape: f32[32,32], index: 1, kind: input, shape index: {}]
  %s2 = inlined_call_operand.vmem [shape: f32[1,32], index: 2, kind: input, shape index: {}]
  %s3 = inlined_call_operand.hbm [shape: f32[32,32], index: 3, kind: input, shape index: {}]
  %s4 = inlined_call_operand.vmem [shape: f32[1,32], index: 4, kind: input, shape index: {}]
  %s5 = inlined_call_operand.hbm [shape: f32[32,32], index: 5, kind: input, shape index: {}]
  %s6 = inlined_call_operand.vmem [shape: f32[1,32], index: 6, kind: input, shape index: {}]
  %s7 = inlined_call_operand.hbm [shape: f32[32,32], index: 7, kind: input, shape index: {}]
  %s8 = inlined_call_operand.vmem [shape: f32[1,32], index: 8, kind: input, shape index: {}]
  %s9 = inlined_call_operand.vmem [shape: f32[1,32], index: 9, kind: input, shape index: {}]
  %s10 = inlined_call_operand.vmem [shape: f32[1,32], index: 10, kind: input, shape index: {}]
  %s11 = inlined_call_operand.vmem [shape: f32[1,32], index: 11, kind: input, shape index: {}]
  %s12 = inlined_call_operand.vmem [shape: f32[1,32], index: 12, kind: input, shape index: {}]
  %s13 = inlined_call_operand.hbm [shape: f32[16,32], index: 13, kind: output, shape index: {}]
  %s14 = sld [smem:[#allocation0]]
  $region82: #{tpu_custom_call.1} parent=0
    _
  %s16 = ssub.s32 1, %s14
  %s17 = scalar_select 0, %s16, %s14
  $region1: #{tpu_custom_call.1} parent=0
    #allocation2 [shape = 'u8[8192]{0}', space=vmem, size = 0x2000, scoped, tag = 'input window, operand 0, single buffered']
    #allocation3 [shape = 's32[1]{0}', space=sflag, size = 0x4, scoped, tag = 'scoped memory for tpu_custom_call.1']
    #allocation4 [shape = 's32[1]{0}', space=sflag, size = 0x4, scoped, tag = 'scoped memory for tpu_custom_call.1']
    #allocation5 [shape = 'u8[16384]{0}', space=vmem, size = 0x4000, scoped, tag = 'input window, operand 1, single buffered']
    #allocation6 [shape = 's32[1]{0}', space=sflag, size = 0x4, scoped, tag = 'scoped memory for tpu_custom_call.1']
    #allocation7 [shape = 'u8[16384]{0}', space=vmem, size = 0x4000, scoped, tag = 'input window, operand 3, single buffered']
    #allocation8 [shape = 'u8[16384]{0}', space=vmem, size = 0x4000, scoped, tag = 'input window, operand 5, single buffered']
    #allocation9 [shape = 's32[1]{0}', space=sflag, size = 0x4, scoped, tag = 'scoped memory for tpu_custom_call.1']
    #allocation10 [shape = 'u8[16384]{0}', space=vmem, size = 0x4000, scoped, tag = 'input window, operand 7, single buffered']
    #allocation11 [shape = 'u8[8192]{0}', space=vmem, size = 0x2000, scoped, tag = 'output window, operand 0, single buffered']
    %18 = vsyncpa [#allocation3], 0
    %19 = vsyncpa [#allocation6], 0
    %20 = vsyncpa [#allocation9], 0
    %21 = vsyncpa [#allocation4], 0
    // Predicated region
    $region2: #{tpu_custom_call.1} parent=1 // pred_check
      _
    $region3: #{tpu_custom_call.1} parent=1 // pred_check_branch
      %23 = sbr.rel (0) target = $region5
    $region4: #{tpu_custom_call.1} parent=1 // pred_region
      %25 = vsyncadd [#allocation3], 0
      %s26 = sshll.u32 %s0, 4
      %s27 = int_to_ptr.hbm [resolvable:$true] %s26
      %s28 = sshll.u32 [#allocation2], 4
      %s29 = int_to_ptr.vmem [resolvable:$true] %s28
      %34 = dma.hbm_to_vmem [thread:$0]  %s27, 256, %s29, [#allocation3], 128, 128, 8
    $region5: #{tpu_custom_call.1} parent=1 // pred_fallthru
      _
    // Predicated region
    $region6: #{tpu_custom_call.1} parent=1 // pred_check
      _
    $region7: #{tpu_custom_call.1} parent=1 // pred_check_branch
      %36 = sbr.rel (0) target = $region9
    $region8: #{tpu_custom_call.1} parent=1 // pred_region
      %38 = vsyncadd [#allocation6], 0
      %s39 = sshll.u32 %s1, 4
      %s40 = int_to_ptr.hbm [resolvable:$true] %s39
      %s41 = sshll.u32 [#allocation5], 4
      %s42 = int_to_ptr.vmem [resolvable:$true] %s41
      %47 = dma.hbm_to_vmem [thread:$0]  %s40, 512, %s42, [#allocation6], 128, 128, 8
    $region9: #{tpu_custom_call.1} parent=1 // pred_fallthru
      _
    // Predicated region
    $region10: #{tpu_custom_call.1} parent=1 // pred_check
      _
    $region11: #{tpu_custom_call.1} parent=1 // pred_check_branch
      %49 = sbr.rel (0) target = $region13
    $region12: #{tpu_custom_call.1} parent=1 // pred_region
      _
    $region13: #{tpu_custom_call.1} parent=1 // pred_fallthru
      _
    // Predicated region
    $region14: #{tpu_custom_call.1} parent=1 // pred_check
      _
    $region15: #{tpu_custom_call.1} parent=1 // pred_check_branch
      %51 = sbr.rel (0) target = $region17
    $region16: #{tpu_custom_call.1} parent=1 // pred_region
      %53 = vsyncadd [#allocation6], 0
      %s54 = sshll.u32 %s3, 4
      %s55 = int_to_ptr.hbm [resolvable:$true] %s54
      %s56 = sshll.u32 [#allocation7], 4
      %s57 = int_to_ptr.vmem [resolvable:$true] %s56
      %62 = dma.hbm_to_vmem [thread:$0]  %s55, 512, %s57, [#allocation6], 128, 128, 8
    $region17: #{tpu_custom_call.1} parent=1 // pred_fallthru
      _
    // Predicated region
    $region18: #{tpu_custom_call.1} parent=1 // pred_check
      _
    $region19: #{tpu_custom_call.1} parent=1 // pred_check_branch
      %64 = sbr.rel (0) target = $region21
    $region20: #{tpu_custom_call.1} parent=1 // pred_region
      _
    $region21: #{tpu_custom_call.1} parent=1 // pred_fallthru
      _
    // Predicated region
    $region22: #{tpu_custom_call.1} parent=1 // pred_check
      _
    $region23: #{tpu_custom_call.1} parent=1 // pred_check_branch
      %66 = sbr.rel (0) target = $region25
    $region24: #{tpu_custom_call.1} parent=1 // pred_region
      %68 = vsyncadd [#allocation9], 0
      %s69 = sshll.u32 %s5, 4
      %s70 = int_to_ptr.hbm [resolvable:$true] %s69
      %s71 = sshll.u32 [#allocation8], 4
      %s72 = int_to_ptr.vmem [resolvable:$true] %s71
      %77 = dma.hbm_to_vmem [thread:$0]  %s70, 512, %s72, [#allocation9], 128, 128, 8
    $region25: #{tpu_custom_call.1} parent=1 // pred_fallthru
      _
    // Predicated region
    $region26: #{tpu_custom_call.1} parent=1 // pred_check
      _
    $region27: #{tpu_custom_call.1} parent=1 // pred_check_branch
      %79 = sbr.rel (0) target = $region29
    $region28: #{tpu_custom_call.1} parent=1 // pred_region
      _
    $region29: #{tpu_custom_call.1} parent=1 // pred_fallthru
      _
    // Predicated region
    $region30: #{tpu_custom_call.1} parent=1 // pred_check
      _
    $region31: #{tpu_custom_call.1} parent=1 // pred_check_branch
      %81 = sbr.rel (0) target = $region33
    $region32: #{tpu_custom_call.1} parent=1 // pred_region
      %83 = vsyncadd [#allocation9], 0
      %s84 = sshll.u32 %s7, 4
      %s85 = int_to_ptr.hbm [resolvable:$true] %s84
      %s86 = sshll.u32 [#allocation10], 4
      %s87 = int_to_ptr.vmem [resolvable:$true] %s86
      %92 = dma.hbm_to_vmem [thread:$0]  %s85, 512, %s87, [#allocation9], 128, 128, 8
    $region33: #{tpu_custom_call.1} parent=1 // pred_fallthru
      _
    // Predicated region
    $region34: #{tpu_custom_call.1} parent=1 // pred_check
      _
    $region35: #{tpu_custom_call.1} parent=1 // pred_check_branch
      %94 = sbr.rel (0) target = $region37
    $region36: #{tpu_custom_call.1} parent=1 // pred_region
      _
    $region37: #{tpu_custom_call.1} parent=1 // pred_fallthru
      _
    // Predicated region
    $region38: #{tpu_custom_call.1} parent=1 // pred_check
      _
    $region39: #{tpu_custom_call.1} parent=1 // pred_check_branch
      %96 = sbr.rel (0) target = $region41
    $region40: #{tpu_custom_call.1} parent=1 // pred_region
      _
    $region41: #{tpu_custom_call.1} parent=1 // pred_fallthru
      _
    // Predicated region
    $region42: #{tpu_custom_call.1} parent=1 // pred_check
      _
    $region43: #{tpu_custom_call.1} parent=1 // pred_check_branch
      %98 = sbr.rel (0) target = $region45
    $region44: #{tpu_custom_call.1} parent=1 // pred_region
      _
    $region45: #{tpu_custom_call.1} parent=1 // pred_fallthru
      _
    // Predicated region
    $region46: #{tpu_custom_call.1} parent=1 // pred_check
      _
    $region47: #{tpu_custom_call.1} parent=1 // pred_check_branch
      %100 = sbr.rel (0) target = $region49
    $region48: #{tpu_custom_call.1} parent=1 // pred_region
      _
    $region49: #{tpu_custom_call.1} parent=1 // pred_fallthru
      _
    // Predicated region
    $region50: #{tpu_custom_call.1} parent=1 // pred_check
      _
    $region51: #{tpu_custom_call.1} parent=1 // pred_check_branch
      %102 = sbr.rel (0) target = $region53
    $region52: #{tpu_custom_call.1} parent=1 // pred_region
      _
    $region53: #{tpu_custom_call.1} parent=1 // pred_fallthru
      _
    // Predicated region
    $region54: #{tpu_custom_call.1} parent=1 // pred_check
      _
    $region55: #{tpu_custom_call.1} parent=1 // pred_check_branch
      %104 = sbr.rel (0) target = $region57
    $region56: #{tpu_custom_call.1} parent=1 // pred_region
      %106 = dma.done [#allocation3], 256
    $region57: #{tpu_custom_call.1} parent=1 // pred_fallthru
      _
    // Predicated region
    $region58: #{tpu_custom_call.1} parent=1 // pred_check
      _
    $region59: #{tpu_custom_call.1} parent=1 // pred_check_branch
      %108 = sbr.rel (0) target = $region61
    $region60: #{tpu_custom_call.1} parent=1 // pred_region
      %110 = dma.done [#allocation6], 512
    $region61: #{tpu_custom_call.1} parent=1 // pred_fallthru
      _
    // Predicated region
    $region62: #{tpu_custom_call.1} parent=1 // pred_check
      _
    $region63: #{tpu_custom_call.1} parent=1 // pred_check_branch
      %112 = sbr.rel (0) target = $region65
    $region64: #{tpu_custom_call.1} parent=1 // pred_region
      %114 = dma.done [#allocation6], 512
    $region65: #{tpu_custom_call.1} parent=1 // pred_fallthru
      _
    // Predicated region
    $region66: #{tpu_custom_call.1} parent=1 // pred_check
      _
    $region67: #{tpu_custom_call.1} parent=1 // pred_check_branch
      %116 = sbr.rel (0) target = $region69
    $region68: #{tpu_custom_call.1} parent=1 // pred_region
      %118 = dma.done [#allocation9], 512
    $region69: #{tpu_custom_call.1} parent=1 // pred_fallthru
      _
    // Predicated region
    $region70: #{tpu_custom_call.1} parent=1 // pred_check
      _
    $region71: #{tpu_custom_call.1} parent=1 // pred_check_branch
      %120 = sbr.rel (0) target = $region73
    $region72: #{tpu_custom_call.1} parent=1 // pred_region
      %122 = dma.done [#allocation9], 512
    $region73: #{tpu_custom_call.1} parent=1 // pred_fallthru
      _
    %v123 = vld [vmem:[#allocation2] sm:$0xff]
    %v124 = vld [vmem:[#allocation2 + $0x8] sm:$0xff]
    %v125 = vld [vmem:[%s9] sm:$0x1]
    %v126 = vld [vmem:[%s10] sm:$0x1]
    %vm127 = vcmask 261120
    %v128 = vsel %vm127, %v123, 0.0
    %129 = vadd.xlane.f32.xlu0 %v128
    %v130 = vpop.xlane.xlu0 %129
    %v131 = vsel %vm127, %v124, 0.0
    %132 = vadd.xlane.f32.xlu0 %v131
    %v133 = vpop.xlane.xlu0 %132
    %v134 = vrcp.pop 32.0
    %v135 = vmul.f32 32.0, %v134
    %v136 = vsub.f32 1.0, %v135
    %v137 = vmul.f32 %v134, %v136
    %v138 = vadd.f32 %v134, %v137
    %vm139 = vweird.f32 %v134
    %v140 = vsel %vm139, %v134, %v138
    %v141 = vmul.f32 %v130, %v140
    %v142 = vmul.f32 %v133, %v140
    %v143 = vsub.f32 %v123, %v141
    %v144 = vsub.f32 %v124, %v142
    %v145 = vmul.f32 %v143, %v143
    %v146 = vmul.f32 %v144, %v144
    %v147 = vsel %vm127, %v145, 0.0
    %148 = vadd.xlane.f32.xlu0 %v147
    %v149 = vpop.xlane.xlu0 %148
    %v150 = vsel %vm127, %v146, 0.0
    %151 = vadd.xlane.f32.xlu0 %v150
    %v152 = vpop.xlane.xlu0 %151
    %v153 = vmul.f32 %v149, %v140
    %v154 = vmul.f32 %v152, %v140
    %v155 = vadd.f32 %v153, 1e-05
    %v156 = vadd.f32 %v154, 1e-05
    %v157 = vrsqrt.pop %v155
    %v158 = vmul.f32 %v157, %v155
    %v159 = vmul.f32 %v158, %v157
    %v160 = vmul.f32 0.5, %v159
    %v161 = vsub.f32 1.5, %v160
    %v162 = vmul.f32 %v157, %v161
    %vm163 = vweird.f32 %v155
    %vm164 = vweird.f32 %v157
    %vm165 = vmor %vm163, %vm164
    %v166 = vsel %vm165, %v157, %v162
    %v167 = vrsqrt.pop %v156
    %v168 = vmul.f32 %v167, %v156
    %v169 = vmul.f32 %v168, %v167
    %v170 = vmul.f32 0.5, %v169
    %v171 = vsub.f32 1.5, %v170
    %v172 = vmul.f32 %v167, %v171
    %vm173 = vweird.f32 %v156
    %vm174 = vweird.f32 %v167
    %vm175 = vmor %vm173, %vm174
    %v176 = vsel %vm175, %v167, %v172
    %v177 = vmul.f32 %v143, %v166
    %v178 = vmul.f32 %v144, %v176
    %v180 = vperm.slane %v125, 0
    %v182 = vmul.f32 %v177, %v180
    %v183 = vmul.f32 %v178, %v180
    %v185 = vperm.slane %v126, 0
    %v187 = vadd.f32 %v182, %v185
    %v188 = vadd.f32 %v183, %v185
    %v189 = vld [vmem:[#allocation5] sm:$0xff]
    %v190 = vld [vmem:[#allocation5 + $0x8] sm:$0xff]
    %v191 = vld [vmem:[#allocation5 + $0x10] sm:$0xff]
    %v192 = vld [vmem:[#allocation5 + $0x18] sm:$0xff]
    %v193 = vld [vmem:[%s2] sm:$0x1]
    %v195 = vperm.slane %v193, 0
    %v198 = vsel %vm127, %v187, 0
    %v201 = vsel %vm127, %v188, 0
    %203 = vmatpush.msra.mxu0 0.0
    %204 = vmatpush.msra.mxu0 0.0
    %205 = vmatpush.msra.mxu0 0.0
    %206 = vmatpush.msra.mxu0 0.0
    %207 = vmatpush.msra.mxu0 0.0
    %208 = vmatpush.msra.mxu0 0.0
    %209 = vmatpush.msra.mxu0 0.0
    %210 = vmatpush.msra.mxu0 0.0
    %211 = vmatpush.msra.mxu0 0.0
    %212 = vmatpush.msra.mxu0 0.0
    %213 = vmatpush.msra.mxu0 0.0
    %214 = vmatpush.msra.mxu0 0.0
    %215 = vmatpush.msra.mxu0 %v192
    %216 = vmatpush.msra.mxu0 %v191
    %217 = vmatpush.msra.mxu0 %v190
    %218 = vmatpush.msra.mxu0 %v189
    %219 = vmatmul.f32.gmra.mxu0 %v198
    %v220 = vpop.f32.mrf.mxu0
    %v221 = vadd.f32 %v195, %v220
    %222 = vmatmul.f32.gmra.mxu0 %v201
    %v223 = vpop.f32.mrf.mxu0
    %v224 = vadd.f32 %v195, %v223
    %225 = vdwg.mxu0
    %v226 = vld [vmem:[#allocation7] sm:$0xff]
    %v227 = vld [vmem:[#allocation7 + $0x8] sm:$0xff]
    %v228 = vld [vmem:[#allocation7 + $0x10] sm:$0xff]
    %v229 = vld [vmem:[#allocation7 + $0x18] sm:$0xff]
    %v230 = vld [vmem:[%s4] sm:$0x1]
    %v232 = vperm.slane %v230, 0
    %234 = vmatpush.msra.mxu0 0.0
    %235 = vmatpush.msra.mxu0 0.0
    %236 = vmatpush.msra.mxu0 0.0
    %237 = vmatpush.msra.mxu0 0.0
    %238 = vmatpush.msra.mxu0 0.0
    %239 = vmatpush.msra.mxu0 0.0
    %240 = vmatpush.msra.mxu0 0.0
    %241 = vmatpush.msra.mxu0 0.0
    %242 = vmatpush.msra.mxu0 0.0
    %243 = vmatpush.msra.mxu0 0.0
    %244 = vmatpush.msra.mxu0 0.0
    %245 = vmatpush.msra.mxu0 0.0
    %246 = vmatpush.msra.mxu0 %v229
    %247 = vmatpush.msra.mxu0 %v228
    %248 = vmatpush.msra.mxu0 %v227
    %249 = vmatpush.msra.mxu0 %v226
    %250 = vmatmul.f32.gmra.mxu0 %v198
    %v251 = vpop.f32.mrf.mxu0
    %v252 = vadd.f32 %v232, %v251
    %253 = vmatmul.f32.gmra.mxu0 %v201
    %v254 = vpop.f32.mrf.mxu0
    %v255 = vadd.f32 %v232, %v254
    %256 = vdwg.mxu0
    %v257 = vld [vmem:[#allocation8] sm:$0xff]
    %v258 = vld [vmem:[#allocation8 + $0x8] sm:$0xff]
    %v259 = vld [vmem:[#allocation8 + $0x10] sm:$0xff]
    %v260 = vld [vmem:[#allocation8 + $0x18] sm:$0xff]
    %v261 = vld [vmem:[%s6] sm:$0x1]
    %v263 = vperm.slane %v261, 0
    %265 = vmatpush.msra.mxu0 0.0
    %266 = vmatpush.msra.mxu0 0.0
    %267 = vmatpush.msra.mxu0 0.0
    %268 = vmatpush.msra.mxu0 0.0
    %269 = vmatpush.msra.mxu0 0.0
    %270 = vmatpush.msra.mxu0 0.0
    %271 = vmatpush.msra.mxu0 0.0
    %272 = vmatpush.msra.mxu0 0.0
    %273 = vmatpush.msra.mxu0 0.0
    %274 = vmatpush.msra.mxu0 0.0
    %275 = vmatpush.msra.mxu0 0.0
    %276 = vmatpush.msra.mxu0 0.0
    %277 = vmatpush.msra.mxu0 %v260
    %278 = vmatpush.msra.mxu0 %v259
    %279 = vmatpush.msra.mxu0 %v258
    %280 = vmatpush.msra.mxu0 %v257
    %281 = vmatmul.f32.gmra.mxu0 %v198
    %v282 = vpop.f32.mrf.mxu0
    %v283 = vadd.f32 %v263, %v282
    %284 = vmatmul.f32.gmra.mxu0 %v201
    %v285 = vpop.f32.mrf.mxu0
    %v286 = vadd.f32 %v263, %v285
    %287 = vdwg.mxu0
    %v288 = vmul.f32 %v221, 0.35355338
    %v289 = vmul.f32 %v224, 0.35355338
    %v290 = vld [vmem:[#allocation10] sm:$0xff]
    %v291 = vld [vmem:[#allocation10 + $0x8] sm:$0xff]
    %v292 = vld [vmem:[#allocation10 + $0x10] sm:$0xff]
    %v293 = vld [vmem:[#allocation10 + $0x18] sm:$0xff]
    %vm294 = vcmask 64512
    %v296 = vsel %vm294, %v288, 0
    %v299 = vsel %vm294, %v252, 0
    %301 = vmatpush.xpose.msra.mxu0 0.0
    %302 = vmatpush.xpose.msra.mxu0 0.0
    %303 = vmatpush.xpose.msra.mxu0 0.0
    %304 = vmatpush.xpose.msra.mxu0 0.0
    %305 = vmatpush.xpose.msra.mxu0 0.0
    %306 = vmatpush.xpose.msra.mxu0 0.0
    %307 = vmatpush.xpose.msra.mxu0 0.0
    %308 = vmatpush.xpose.msra.mxu0 0.0
    %309 = vmatpush.xpose.msra.mxu0 0.0
    %310 = vmatpush.xpose.msra.mxu0 0.0
    %311 = vmatpush.xpose.msra.mxu0 0.0
    %312 = vmatpush.xpose.msra.mxu0 0.0
    %313 = vmatpush.xpose.msra.mxu0 0.0
    %314 = vmatpush.xpose.msra.mxu0 0.0
    %315 = vmatpush.xpose.msra.mxu0 0.0
    %316 = vmatpush.xpose.msra.mxu0 %v299
    %317 = vmatmul.f32.gmra.mxu0 %v296
    %v318 = vpop.f32.mrf.mxu0
    %v319 = vadd.f32 0.0, %v318
    %320 = vdwg.mxu0
    %v321 = vsel %vm294, %v319, -inf
    %322 = vmax.xlane.f32.xlu0 %v321
    %v323 = vpop.xlane.xlu0 %322
    %v324 = vsub.f32 %v319, %v323
    %v325 = vmul.f32 %v324, 1.442695
    %v326 = vpow.pop %v325
    %v327 = vsel %vm294, %v326, 0.0
    %328 = vadd.xlane.f32.xlu0 %v327
    %v329 = vpop.xlane.xlu0 %328
    %v330 = vrcp.pop %v329
    %v331 = vmul.f32 %v329, %v330
    %v332 = vsub.f32 1.0, %v331
    %v333 = vmul.f32 %v330, %v332
    %v334 = vadd.f32 %v330, %v333
    %vm335 = vweird.f32 %v329
    %vm336 = vweird.f32 %v330
    %vm337 = vmor %vm335, %vm336
    %v338 = vsel %vm337, %v330, %v334
    %v339 = vand.u32 2147483647, %v329
    %vm340 = vcmp.eq.f32.partialorder %v339, 8.507059e+37
    %v341 = vand.u32 %v329, 2147483648
    %v342 = vor.u32 1.1754944e-38, %v341
    %v343 = vsel %vm340, %v342, %v338
    %v344 = vmul.f32 %v326, %v343
    %v346 = vsel %vm294, %v344, 0
    %348 = vmatpush.msra.mxu0 0.0
    %349 = vmatpush.msra.mxu0 0.0
    %350 = vmatpush.msra.mxu0 0.0
    %351 = vmatpush.msra.mxu0 0.0
    %352 = vmatpush.msra.mxu0 0.0
    %353 = vmatpush.msra.mxu0 0.0
    %354 = vmatpush.msra.mxu0 0.0
    %355 = vmatpush.msra.mxu0 0.0
    %356 = vmatpush.msra.mxu0 0.0
    %357 = vmatpush.msra.mxu0 0.0
    %358 = vmatpush.msra.mxu0 0.0
    %359 = vmatpush.msra.mxu0 0.0
    %360 = vmatpush.msra.mxu0 0.0
    %361 = vmatpush.msra.mxu0 0.0
    %362 = vmatpush.msra.mxu0 0.0
    %363 = vmatpush.msra.mxu0 %v283
    %364 = vmatmul.f32.gmra.mxu0 %v346
    %v365 = vpop.f32.mrf.mxu0
    %v366 = vadd.f32 0.0, %v365
    %367 = vdwg.mxu0
    %368 = vrot.lane.b32.xlu0 %v288, 120
    %v369 = vpop.permute.xlu0 %368
    %370 = vrot.lane.b32.xlu0 %v252, 120
    %v371 = vpop.permute.xlu0 %370
    %v372 = vsel %vm294, %v369, 0
    %v374 = vsel %vm294, %v371, 0
    %376 = vmatpush.xpose.msra.mxu0 0.0
    %377 = vmatpush.xpose.msra.mxu0 0.0
    %378 = vmatpush.xpose.msra.mxu0 0.0
    %379 = vmatpush.xpose.msra.mxu0 0.0
    %380 = vmatpush.xpose.msra.mxu0 0.0
    %381 = vmatpush.xpose.msra.mxu0 0.0
    %382 = vmatpush.xpose.msra.mxu0 0.0
    %383 = vmatpush.xpose.msra.mxu0 0.0
    %384 = vmatpush.xpose.msra.mxu0 0.0
    %385 = vmatpush.xpose.msra.mxu0 0.0
    %386 = vmatpush.xpose.msra.mxu0 0.0
    %387 = vmatpush.xpose.msra.mxu0 0.0
    %388 = vmatpush.xpose.msra.mxu0 0.0
    %389 = vmatpush.xpose.msra.mxu0 0.0
    %390 = vmatpush.xpose.msra.mxu0 0.0
    %391 = vmatpush.xpose.msra.mxu0 %v374
    %392 = vmatmul.f32.gmra.mxu0 %v372
    %v393 = vpop.f32.mrf.mxu0
    %v394 = vadd.f32 0.0, %v393
    %395 = vdwg.mxu0
    %v396 = vsel %vm294, %v394, -inf
    %397 = vmax.xlane.f32.xlu0 %v396
    %v398 = vpop.xlane.xlu0 %397
    %v399 = vsub.f32 %v394, %v398
    %v400 = vmul.f32 %v399, 1.442695
    %v401 = vpow.pop %v400
    %v402 = vsel %vm294, %v401, 0.0
    %403 = vadd.xlane.f32.xlu0 %v402
    %v404 = vpop.xlane.xlu0 %403
    %v405 = vrcp.pop %v404
    %v406 = vmul.f32 %v404, %v405
    %v407 = vsub.f32 1.0, %v406
    %v408 = vmul.f32 %v405, %v407
    %v409 = vadd.f32 %v405, %v408
    %vm410 = vweird.f32 %v404
    %vm411 = vweird.f32 %v405
    %vm412 = vmor %vm410, %vm411
    %v413 = vsel %vm412, %v405, %v409
    %v414 = vand.u32 2147483647, %v404
    %vm415 = vcmp.eq.f32.partialorder %v414, 8.507059e+37
    %v416 = vand.u32 %v404, 2147483648
    %v417 = vor.u32 1.1754944e-38, %v416
    %v418 = vsel %vm415, %v417, %v413
    %v419 = vmul.f32 %v401, %v418
    %421 = vrot.lane.b32.xlu0 %v283, 120
    %v422 = vpop.permute.xlu0 %421
    %v425 = vsel %vm294, %v419, 0
    %427 = vmatpush.msra.mxu0 0.0
    %428 = vmatpush.msra.mxu0 0.0
    %429 = vmatpush.msra.mxu0 0.0
    %430 = vmatpush.msra.mxu0 0.0
    %431 = vmatpush.msra.mxu0 0.0
    %432 = vmatpush.msra.mxu0 0.0
    %433 = vmatpush.msra.mxu0 0.0
    %434 = vmatpush.msra.mxu0 0.0
    %435 = vmatpush.msra.mxu0 0.0
    %436 = vmatpush.msra.mxu0 0.0
    %437 = vmatpush.msra.mxu0 0.0
    %438 = vmatpush.msra.mxu0 0.0
    %439 = vmatpush.msra.mxu0 0.0
    %440 = vmatpush.msra.mxu0 0.0
    %441 = vmatpush.msra.mxu0 0.0
    %442 = vmatpush.msra.mxu0 %v422
    %443 = vmatmul.f32.gmra.mxu0 %v425
    %v444 = vpop.f32.mrf.mxu0
    %v445 = vadd.f32 0.0, %v444
    %446 = vdwg.mxu0
    %v448 = vsel %vm294, %v445, 0
    %450 = vmatpush.msra.mxu0 0.0
    %451 = vmatpush.msra.mxu0 0.0
    %452 = vmatpush.msra.mxu0 0.0
    %453 = vmatpush.msra.mxu0 0.0
    %454 = vmatpush.msra.mxu0 0.0
    %455 = vmatpush.msra.mxu0 0.0
    %456 = vmatpush.msra.mxu0 0.0
    %457 = vmatpush.msra.mxu0 0.0
    %458 = vmatpush.msra.mxu0 0.0
    %459 = vmatpush.msra.mxu0 0.0
    %460 = vmatpush.msra.mxu0 0.0
    %461 = vmatpush.msra.mxu0 0.0
    %462 = vmatpush.msra.mxu0 0.0
    %463 = vmatpush.msra.mxu0 0.0
    %464 = vmatpush.msra.mxu0 0.0
    %465 = vmatpush.msra.mxu0 %v291
    %466 = vmatmul.f32.gmra.mxu0 %v448
    %v467 = vpop.f32.mrf.mxu0
    %v468 = vadd.f32 0.0, %v467
    %469 = vdwg.mxu0
    %v471 = vsel %vm294, %v366, 0
    %473 = vmatpush.msra.mxu0 0.0
    %474 = vmatpush.msra.mxu0 0.0
    %475 = vmatpush.msra.mxu0 0.0
    %476 = vmatpush.msra.mxu0 0.0
    %477 = vmatpush.msra.mxu0 0.0
    %478 = vmatpush.msra.mxu0 0.0
    %479 = vmatpush.msra.mxu0 0.0
    %480 = vmatpush.msra.mxu0 0.0
    %481 = vmatpush.msra.mxu0 0.0
    %482 = vmatpush.msra.mxu0 0.0
    %483 = vmatpush.msra.mxu0 0.0
    %484 = vmatpush.msra.mxu0 0.0
    %485 = vmatpush.msra.mxu0 0.0
    %486 = vmatpush.msra.mxu0 0.0
    %487 = vmatpush.msra.mxu0 0.0
    %488 = vmatpush.msra.mxu0 %v290
    %489 = vmatmul.f32.gmra.mxu0 %v471
    %v490 = vpop.f32.mrf.mxu0
    %v491 = vadd.f32 %v468, %v490
    %492 = vdwg.mxu0
    %493 = vrot.lane.b32.xlu0 %v288, 112
    %v494 = vpop.permute.xlu0 %493
    %495 = vrot.lane.b32.xlu0 %v252, 112
    %v496 = vpop.permute.xlu0 %495
    %v497 = vsel %vm294, %v494, 0
    %v499 = vsel %vm294, %v496, 0
    %501 = vmatpush.xpose.msra.mxu0 0.0
    %502 = vmatpush.xpose.msra.mxu0 0.0
    %503 = vmatpush.xpose.msra.mxu0 0.0
    %504 = vmatpush.xpose.msra.mxu0 0.0
    %505 = vmatpush.xpose.msra.mxu0 0.0
    %506 = vmatpush.xpose.msra.mxu0 0.0
    %507 = vmatpush.xpose.msra.mxu0 0.0
    %508 = vmatpush.xpose.msra.mxu0 0.0
    %509 = vmatpush.xpose.msra.mxu0 0.0
    %510 = vmatpush.xpose.msra.mxu0 0.0
    %511 = vmatpush.xpose.msra.mxu0 0.0
    %512 = vmatpush.xpose.msra.mxu0 0.0
    %513 = vmatpush.xpose.msra.mxu0 0.0
    %514 = vmatpush.xpose.msra.mxu0 0.0
    %515 = vmatpush.xpose.msra.mxu0 0.0
    %516 = vmatpush.xpose.msra.mxu0 %v499
    %517 = vmatmul.f32.gmra.mxu0 %v497
    %v518 = vpop.f32.mrf.mxu0
    %v519 = vadd.f32 0.0, %v518
    %520 = vdwg.mxu0
    %v521 = vsel %vm294, %v519, -inf
    %522 = vmax.xlane.f32.xlu0 %v521
    %v523 = vpop.xlane.xlu0 %522
    %v524 = vsub.f32 %v519, %v523
    %v525 = vmul.f32 %v524, 1.442695
    %v526 = vpow.pop %v525
    %v527 = vsel %vm294, %v526, 0.0
    %528 = vadd.xlane.f32.xlu0 %v527
    %v529 = vpop.xlane.xlu0 %528
    %v530 = vrcp.pop %v529
    %v531 = vmul.f32 %v529, %v530
    %v532 = vsub.f32 1.0, %v531
    %v533 = vmul.f32 %v530, %v532
    %v534 = vadd.f32 %v530, %v533
    %vm535 = vweird.f32 %v529
    %vm536 = vweird.f32 %v530
    %vm537 = vmor %vm535, %vm536
    %v538 = vsel %vm537, %v530, %v534
    %v539 = vand.u32 2147483647, %v529
    %vm540 = vcmp.eq.f32.partialorder %v539, 8.507059e+37
    %v541 = vand.u32 %v529, 2147483648
    %v542 = vor.u32 1.1754944e-38, %v541
    %v543 = vsel %vm540, %v542, %v538
    %v544 = vmul.f32 %v526, %v543
    %545 = vrot.lane.b32.xlu0 %v283, 112
    %v546 = vpop.permute.xlu0 %545
    %v549 = vsel %vm294, %v544, 0
    %551 = vmatpush.msra.mxu0 0.0
    %552 = vmatpush.msra.mxu0 0.0
    %553 = vmatpush.msra.mxu0 0.0
    %554 = vmatpush.msra.mxu0 0.0
    %555 = vmatpush.msra.mxu0 0.0
    %556 = vmatpush.msra.mxu0 0.0
    %557 = vmatpush.msra.mxu0 0.0
    %558 = vmatpush.msra.mxu0 0.0
    %559 = vmatpush.msra.mxu0 0.0
    %560 = vmatpush.msra.mxu0 0.0
    %561 = vmatpush.msra.mxu0 0.0
    %562 = vmatpush.msra.mxu0 0.0
    %563 = vmatpush.msra.mxu0 0.0
    %564 = vmatpush.msra.mxu0 0.0
    %565 = vmatpush.msra.mxu0 0.0
    %566 = vmatpush.msra.mxu0 %v546
    %567 = vmatmul.f32.gmra.mxu0 %v549
    %v568 = vpop.f32.mrf.mxu0
    %v569 = vadd.f32 0.0, %v568
    %570 = vdwg.mxu0
    %v572 = vsel %vm294, %v569, 0
    %574 = vmatpush.msra.mxu0 0.0
    %575 = vmatpush.msra.mxu0 0.0
    %576 = vmatpush.msra.mxu0 0.0
    %577 = vmatpush.msra.mxu0 0.0
    %578 = vmatpush.msra.mxu0 0.0
    %579 = vmatpush.msra.mxu0 0.0
    %580 = vmatpush.msra.mxu0 0.0
    %581 = vmatpush.msra.mxu0 0.0
    %582 = vmatpush.msra.mxu0 0.0
    %583 = vmatpush.msra.mxu0 0.0
    %584 = vmatpush.msra.mxu0 0.0
    %585 = vmatpush.msra.mxu0 0.0
    %586 = vmatpush.msra.mxu0 0.0
    %587 = vmatpush.msra.mxu0 0.0
    %588 = vmatpush.msra.mxu0 0.0
    %589 = vmatpush.msra.mxu0 %v292
    %590 = vmatmul.f32.gmra.mxu0 %v572
    %v591 = vpop.f32.mrf.mxu0
    %v592 = vadd.f32 0.0, %v591
    %593 = vdwg.mxu0
    %v594 = vadd.f32 %v491, %v592
    %595 = vrot.lane.b32.xlu0 %v288, 104
    %v596 = vpop.permute.xlu0 %595
    %597 = vrot.lane.b32.xlu0 %v252, 104
    %v598 = vpop.permute.xlu0 %597
    %v599 = vsel %vm294, %v596, 0
    %v601 = vsel %vm294, %v598, 0
    %603 = vmatpush.xpose.msra.mxu0 0.0
    %604 = vmatpush.xpose.msra.mxu0 0.0
    %605 = vmatpush.xpose.msra.mxu0 0.0
    %606 = vmatpush.xpose.msra.mxu0 0.0
    %607 = vmatpush.xpose.msra.mxu0 0.0
    %608 = vmatpush.xpose.msra.mxu0 0.0
    %609 = vmatpush.xpose.msra.mxu0 0.0
    %610 = vmatpush.xpose.msra.mxu0 0.0
    %611 = vmatpush.xpose.msra.mxu0 0.0
    %612 = vmatpush.xpose.msra.mxu0 0.0
    %613 = vmatpush.xpose.msra.mxu0 0.0
    %614 = vmatpush.xpose.msra.mxu0 0.0
    %615 = vmatpush.xpose.msra.mxu0 0.0
    %616 = vmatpush.xpose.msra.mxu0 0.0
    %617 = vmatpush.xpose.msra.mxu0 0.0
    %618 = vmatpush.xpose.msra.mxu0 %v601
    %619 = vmatmul.f32.gmra.mxu0 %v599
    %v620 = vpop.f32.mrf.mxu0
    %v621 = vadd.f32 0.0, %v620
    %622 = vdwg.mxu0
    %v623 = vsel %vm294, %v621, -inf
    %624 = vmax.xlane.f32.xlu0 %v623
    %v625 = vpop.xlane.xlu0 %624
    %v626 = vsub.f32 %v621, %v625
    %v627 = vmul.f32 %v626, 1.442695
    %v628 = vpow.pop %v627
    %v629 = vsel %vm294, %v628, 0.0
    %630 = vadd.xlane.f32.xlu0 %v629
    %v631 = vpop.xlane.xlu0 %630
    %v632 = vrcp.pop %v631
    %v633 = vmul.f32 %v631, %v632
    %v634 = vsub.f32 1.0, %v633
    %v635 = vmul.f32 %v632, %v634
    %v636 = vadd.f32 %v632, %v635
    %vm637 = vweird.f32 %v631
    %vm638 = vweird.f32 %v632
    %vm639 = vmor %vm637, %vm638
    %v640 = vsel %vm639, %v632, %v636
    %v641 = vand.u32 2147483647, %v631
    %vm642 = vcmp.eq.f32.partialorder %v641, 8.507059e+37
    %v643 = vand.u32 %v631, 2147483648
    %v644 = vor.u32 1.1754944e-38, %v643
    %v645 = vsel %vm642, %v644, %v640
    %v646 = vmul.f32 %v628, %v645
    %647 = vrot.lane.b32.xlu0 %v283, 104
    %v648 = vpop.permute.xlu0 %647
    %v651 = vsel %vm294, %v646, 0
    %653 = vmatpush.msra.mxu0 0.0
    %654 = vmatpush.msra.mxu0 0.0
    %655 = vmatpush.msra.mxu0 0.0
    %656 = vmatpush.msra.mxu0 0.0
    %657 = vmatpush.msra.mxu0 0.0
    %658 = vmatpush.msra.mxu0 0.0
    %659 = vmatpush.msra.mxu0 0.0
    %660 = vmatpush.msra.mxu0 0.0
    %661 = vmatpush.msra.mxu0 0.0
    %662 = vmatpush.msra.mxu0 0.0
    %663 = vmatpush.msra.mxu0 0.0
    %664 = vmatpush.msra.mxu0 0.0
    %665 = vmatpush.msra.mxu0 0.0
    %666 = vmatpush.msra.mxu0 0.0
    %667 = vmatpush.msra.mxu0 0.0
    %668 = vmatpush.msra.mxu0 %v648
    %669 = vmatmul.f32.gmra.mxu0 %v651
    %v670 = vpop.f32.mrf.mxu0
    %v671 = vadd.f32 0.0, %v670
    %672 = vdwg.mxu0
    %v674 = vsel %vm294, %v671, 0
    %676 = vmatpush.msra.mxu0 0.0
    %677 = vmatpush.msra.mxu0 0.0
    %678 = vmatpush.msra.mxu0 0.0
    %679 = vmatpush.msra.mxu0 0.0
    %680 = vmatpush.msra.mxu0 0.0
    %681 = vmatpush.msra.mxu0 0.0
    %682 = vmatpush.msra.mxu0 0.0
    %683 = vmatpush.msra.mxu0 0.0
    %684 = vmatpush.msra.mxu0 0.0
    %685 = vmatpush.msra.mxu0 0.0
    %686 = vmatpush.msra.mxu0 0.0
    %687 = vmatpush.msra.mxu0 0.0
    %688 = vmatpush.msra.mxu0 0.0
    %689 = vmatpush.msra.mxu0 0.0
    %690 = vmatpush.msra.mxu0 0.0
    %691 = vmatpush.msra.mxu0 %v293
    %692 = vmatmul.f32.gmra.mxu0 %v674
    %v693 = vpop.f32.mrf.mxu0
    %v694 = vadd.f32 0.0, %v693
    %695 = vdwg.mxu0
    %v696 = vadd.f32 %v594, %v694
    %v698 = vsel %vm294, %v289, 0
    %v701 = vsel %vm294, %v255, 0
    %703 = vmatpush.xpose.msra.mxu0 0.0
    %704 = vmatpush.xpose.msra.mxu0 0.0
    %705 = vmatpush.xpose.msra.mxu0 0.0
    %706 = vmatpush.xpose.msra.mxu0 0.0
    %707 = vmatpush.xpose.msra.mxu0 0.0
    %708 = vmatpush.xpose.msra.mxu0 0.0
    %709 = vmatpush.xpose.msra.mxu0 0.0
    %710 = vmatpush.xpose.msra.mxu0 0.0
    %711 = vmatpush.xpose.msra.mxu0 0.0
    %712 = vmatpush.xpose.msra.mxu0 0.0
    %713 = vmatpush.xpose.msra.mxu0 0.0
    %714 = vmatpush.xpose.msra.mxu0 0.0
    %715 = vmatpush.xpose.msra.mxu0 0.0
    %716 = vmatpush.xpose.msra.mxu0 0.0
    %717 = vmatpush.xpose.msra.mxu0 0.0
    %718 = vmatpush.xpose.msra.mxu0 %v701
    %719 = vmatmul.f32.gmra.mxu0 %v698
    %v720 = vpop.f32.mrf.mxu0
    %v721 = vadd.f32 0.0, %v720
    %722 = vdwg.mxu0
    %v723 = vsel %vm294, %v721, -inf
    %724 = vmax.xlane.f32.xlu0 %v723
    %v725 = vpop.xlane.xlu0 %724
    %v726 = vsub.f32 %v721, %v725
    %v727 = vmul.f32 %v726, 1.442695
    %v728 = vpow.pop %v727
    %v729 = vsel %vm294, %v728, 0.0
    %730 = vadd.xlane.f32.xlu0 %v729
    %v731 = vpop.xlane.xlu0 %730
    %v732 = vrcp.pop %v731
    %v733 = vmul.f32 %v731, %v732
    %v734 = vsub.f32 1.0, %v733
    %v735 = vmul.f32 %v732, %v734
    %v736 = vadd.f32 %v732, %v735
    %vm737 = vweird.f32 %v731
    %vm738 = vweird.f32 %v732
    %vm739 = vmor %vm737, %vm738
    %v740 = vsel %vm739, %v732, %v736
    %v741 = vand.u32 2147483647, %v731
    %vm742 = vcmp.eq.f32.partialorder %v741, 8.507059e+37
    %v743 = vand.u32 %v731, 2147483648
    %v744 = vor.u32 1.1754944e-38, %v743
    %v745 = vsel %vm742, %v744, %v740
    %v746 = vmul.f32 %v728, %v745
    %v748 = vsel %vm294, %v746, 0
    %750 = vmatpush.msra.mxu0 0.0
    %751 = vmatpush.msra.mxu0 0.0
    %752 = vmatpush.msra.mxu0 0.0
    %753 = vmatpush.msra.mxu0 0.0
    %754 = vmatpush.msra.mxu0 0.0
    %755 = vmatpush.msra.mxu0 0.0
    %756 = vmatpush.msra.mxu0 0.0
    %757 = vmatpush.msra.mxu0 0.0
    %758 = vmatpush.msra.mxu0 0.0
    %759 = vmatpush.msra.mxu0 0.0
    %760 = vmatpush.msra.mxu0 0.0
    %761 = vmatpush.msra.mxu0 0.0
    %762 = vmatpush.msra.mxu0 0.0
    %763 = vmatpush.msra.mxu0 0.0
    %764 = vmatpush.msra.mxu0 0.0
    %765 = vmatpush.msra.mxu0 %v286
    %766 = vmatmul.f32.gmra.mxu0 %v748
    %v767 = vpop.f32.mrf.mxu0
    %v768 = vadd.f32 0.0, %v767
    %769 = vdwg.mxu0
    %770 = vrot.lane.b32.xlu0 %v289, 120
    %v771 = vpop.permute.xlu0 %770
    %772 = vrot.lane.b32.xlu0 %v255, 120
    %v773 = vpop.permute.xlu0 %772
    %v774 = vsel %vm294, %v771, 0
    %v776 = vsel %vm294, %v773, 0
    %778 = vmatpush.xpose.msra.mxu0 0.0
    %779 = vmatpush.xpose.msra.mxu0 0.0
    %780 = vmatpush.xpose.msra.mxu0 0.0
    %781 = vmatpush.xpose.msra.mxu0 0.0
    %782 = vmatpush.xpose.msra.mxu0 0.0
    %783 = vmatpush.xpose.msra.mxu0 0.0
    %784 = vmatpush.xpose.msra.mxu0 0.0
    %785 = vmatpush.xpose.msra.mxu0 0.0
    %786 = vmatpush.xpose.msra.mxu0 0.0
    %787 = vmatpush.xpose.msra.mxu0 0.0
    %788 = vmatpush.xpose.msra.mxu0 0.0
    %789 = vmatpush.xpose.msra.mxu0 0.0
    %790 = vmatpush.xpose.msra.mxu0 0.0
    %791 = vmatpush.xpose.msra.mxu0 0.0
    %792 = vmatpush.xpose.msra.mxu0 0.0
    %793 = vmatpush.xpose.msra.mxu0 %v776
    %794 = vmatmul.f32.gmra.mxu0 %v774
    %v795 = vpop.f32.mrf.mxu0
    %v796 = vadd.f32 0.0, %v795
    %797 = vdwg.mxu0
    %v798 = vsel %vm294, %v796, -inf
    %799 = vmax.xlane.f32.xlu0 %v798
    %v800 = vpop.xlane.xlu0 %799
    %v801 = vsub.f32 %v796, %v800
    %v802 = vmul.f32 %v801, 1.442695
    %v803 = vpow.pop %v802
    %v804 = vsel %vm294, %v803, 0.0
    %805 = vadd.xlane.f32.xlu0 %v804
    %v806 = vpop.xlane.xlu0 %805
    %v807 = vrcp.pop %v806
    %v808 = vmul.f32 %v806, %v807
    %v809 = vsub.f32 1.0, %v808
    %v810 = vmul.f32 %v807, %v809
    %v811 = vadd.f32 %v807, %v810
    %vm812 = vweird.f32 %v806
    %vm813 = vweird.f32 %v807
    %vm814 = vmor %vm812, %vm813
    %v815 = vsel %vm814, %v807, %v811
    %v816 = vand.u32 2147483647, %v806
    %vm817 = vcmp.eq.f32.partialorder %v816, 8.507059e+37
    %v818 = vand.u32 %v806, 2147483648
    %v819 = vor.u32 1.1754944e-38, %v818
    %v820 = vsel %vm817, %v819, %v815
    %v821 = vmul.f32 %v803, %v820
    %823 = vrot.lane.b32.xlu0 %v286, 120
    %v824 = vpop.permute.xlu0 %823
    %v827 = vsel %vm294, %v821, 0
    %829 = vmatpush.msra.mxu0 0.0
    %830 = vmatpush.msra.mxu0 0.0
    %831 = vmatpush.msra.mxu0 0.0
    %832 = vmatpush.msra.mxu0 0.0
    %833 = vmatpush.msra.mxu0 0.0
    %834 = vmatpush.msra.mxu0 0.0
    %835 = vmatpush.msra.mxu0 0.0
    %836 = vmatpush.msra.mxu0 0.0
    %837 = vmatpush.msra.mxu0 0.0
    %838 = vmatpush.msra.mxu0 0.0
    %839 = vmatpush.msra.mxu0 0.0
    %840 = vmatpush.msra.mxu0 0.0
    %841 = vmatpush.msra.mxu0 0.0
    %842 = vmatpush.msra.mxu0 0.0
    %843 = vmatpush.msra.mxu0 0.0
    %844 = vmatpush.msra.mxu0 %v824
    %845 = vmatmul.f32.gmra.mxu0 %v827
    %v846 = vpop.f32.mrf.mxu0
    %v847 = vadd.f32 0.0, %v846
    %848 = vdwg.mxu0
    %v850 = vsel %vm294, %v847, 0
    %852 = vmatpush.msra.mxu0 0.0
    %853 = vmatpush.msra.mxu0 0.0
    %854 = vmatpush.msra.mxu0 0.0
    %855 = vmatpush.msra.mxu0 0.0
    %856 = vmatpush.msra.mxu0 0.0
    %857 = vmatpush.msra.mxu0 0.0
    %858 = vmatpush.msra.mxu0 0.0
    %859 = vmatpush.msra.mxu0 0.0
    %860 = vmatpush.msra.mxu0 0.0
    %861 = vmatpush.msra.mxu0 0.0
    %862 = vmatpush.msra.mxu0 0.0
    %863 = vmatpush.msra.mxu0 0.0
    %864 = vmatpush.msra.mxu0 0.0
    %865 = vmatpush.msra.mxu0 0.0
    %866 = vmatpush.msra.mxu0 0.0
    %867 = vmatpush.msra.mxu0 %v291
    %868 = vmatmul.f32.gmra.mxu0 %v850
    %v869 = vpop.f32.mrf.mxu0
    %v870 = vadd.f32 0.0, %v869
    %871 = vdwg.mxu0
    %v873 = vsel %vm294, %v768, 0
    %875 = vmatpush.msra.mxu0 0.0
    %876 = vmatpush.msra.mxu0 0.0
    %877 = vmatpush.msra.mxu0 0.0
    %878 = vmatpush.msra.mxu0 0.0
    %879 = vmatpush.msra.mxu0 0.0
    %880 = vmatpush.msra.mxu0 0.0
    %881 = vmatpush.msra.mxu0 0.0
    %882 = vmatpush.msra.mxu0 0.0
    %883 = vmatpush.msra.mxu0 0.0
    %884 = vmatpush.msra.mxu0 0.0
    %885 = vmatpush.msra.mxu0 0.0
    %886 = vmatpush.msra.mxu0 0.0
    %887 = vmatpush.msra.mxu0 0.0
    %888 = vmatpush.msra.mxu0 0.0
    %889 = vmatpush.msra.mxu0 0.0
    %890 = vmatpush.msra.mxu0 %v290
    %891 = vmatmul.f32.gmra.mxu0 %v873
    %v892 = vpop.f32.mrf.mxu0
    %v893 = vadd.f32 %v870, %v892
    %894 = vdwg.mxu0
    %895 = vrot.lane.b32.xlu0 %v289, 112
    %v896 = vpop.permute.xlu0 %895
    %897 = vrot.lane.b32.xlu0 %v255, 112
    %v898 = vpop.permute.xlu0 %897
    %v899 = vsel %vm294, %v896, 0
    %v901 = vsel %vm294, %v898, 0
    %903 = vmatpush.xpose.msra.mxu0 0.0
    %904 = vmatpush.xpose.msra.mxu0 0.0
    %905 = vmatpush.xpose.msra.mxu0 0.0
    %906 = vmatpush.xpose.msra.mxu0 0.0
    %907 = vmatpush.xpose.msra.mxu0 0.0
    %908 = vmatpush.xpose.msra.mxu0 0.0
    %909 = vmatpush.xpose.msra.mxu0 0.0
    %910 = vmatpush.xpose.msra.mxu0 0.0
    %911 = vmatpush.xpose.msra.mxu0 0.0
    %912 = vmatpush.xpose.msra.mxu0 0.0
    %913 = vmatpush.xpose.msra.mxu0 0.0
    %914 = vmatpush.xpose.msra.mxu0 0.0
    %915 = vmatpush.xpose.msra.mxu0 0.0
    %916 = vmatpush.xpose.msra.mxu0 0.0
    %917 = vmatpush.xpose.msra.mxu0 0.0
    %918 = vmatpush.xpose.msra.mxu0 %v901
    %919 = vmatmul.f32.gmra.mxu0 %v899
    %v920 = vpop.f32.mrf.mxu0
    %v921 = vadd.f32 0.0, %v920
    %922 = vdwg.mxu0
    %v923 = vsel %vm294, %v921, -inf
    %924 = vmax.xlane.f32.xlu0 %v923
    %v925 = vpop.xlane.xlu0 %924
    %v926 = vsub.f32 %v921, %v925
    %v927 = vmul.f32 %v926, 1.442695
    %v928 = vpow.pop %v927
    %v929 = vsel %vm294, %v928, 0.0
    %930 = vadd.xlane.f32.xlu0 %v929
    %v931 = vpop.xlane.xlu0 %930
    %v932 = vrcp.pop %v931
    %v933 = vmul.f32 %v931, %v932
    %v934 = vsub.f32 1.0, %v933
    %v935 = vmul.f32 %v932, %v934
    %v936 = vadd.f32 %v932, %v935
    %vm937 = vweird.f32 %v931
    %vm938 = vweird.f32 %v932
    %vm939 = vmor %vm937, %vm938
    %v940 = vsel %vm939, %v932, %v936
    %v941 = vand.u32 2147483647, %v931
    %vm942 = vcmp.eq.f32.partialorder %v941, 8.507059e+37
    %v943 = vand.u32 %v931, 2147483648
    %v944 = vor.u32 1.1754944e-38, %v943
    %v945 = vsel %vm942, %v944, %v940
    %v946 = vmul.f32 %v928, %v945
    %947 = vrot.lane.b32.xlu0 %v286, 112
    %v948 = vpop.permute.xlu0 %947
    %v951 = vsel %vm294, %v946, 0
    %953 = vmatpush.msra.mxu0 0.0
    %954 = vmatpush.msra.mxu0 0.0
    %955 = vmatpush.msra.mxu0 0.0
    %956 = vmatpush.msra.mxu0 0.0
    %957 = vmatpush.msra.mxu0 0.0
    %958 = vmatpush.msra.mxu0 0.0
    %959 = vmatpush.msra.mxu0 0.0
    %960 = vmatpush.msra.mxu0 0.0
    %961 = vmatpush.msra.mxu0 0.0
    %962 = vmatpush.msra.mxu0 0.0
    %963 = vmatpush.msra.mxu0 0.0
    %964 = vmatpush.msra.mxu0 0.0
    %965 = vmatpush.msra.mxu0 0.0
    %966 = vmatpush.msra.mxu0 0.0
    %967 = vmatpush.msra.mxu0 0.0
    %968 = vmatpush.msra.mxu0 %v948
    %969 = vmatmul.f32.gmra.mxu0 %v951
    %v970 = vpop.f32.mrf.mxu0
    %v971 = vadd.f32 0.0, %v970
    %972 = vdwg.mxu0
    %v974 = vsel %vm294, %v971, 0
    %976 = vmatpush.msra.mxu0 0.0
    %977 = vmatpush.msra.mxu0 0.0
    %978 = vmatpush.msra.mxu0 0.0
    %979 = vmatpush.msra.mxu0 0.0
    %980 = vmatpush.msra.mxu0 0.0
    %981 = vmatpush.msra.mxu0 0.0
    %982 = vmatpush.msra.mxu0 0.0
    %983 = vmatpush.msra.mxu0 0.0
    %984 = vmatpush.msra.mxu0 0.0
    %985 = vmatpush.msra.mxu0 0.0
    %986 = vmatpush.msra.mxu0 0.0
    %987 = vmatpush.msra.mxu0 0.0
    %988 = vmatpush.msra.mxu0 0.0
    %989 = vmatpush.msra.mxu0 0.0
    %990 = vmatpush.msra.mxu0 0.0
    %991 = vmatpush.msra.mxu0 %v292
    %992 = vmatmul.f32.gmra.mxu0 %v974
    %v993 = vpop.f32.mrf.mxu0
    %v994 = vadd.f32 0.0, %v993
    %995 = vdwg.mxu0
    %v996 = vadd.f32 %v893, %v994
    %997 = vrot.lane.b32.xlu0 %v289, 104
    %v998 = vpop.permute.xlu0 %997
    %999 = vrot.lane.b32.xlu0 %v255, 104
    %v1000 = vpop.permute.xlu0 %999
    %v1001 = vsel %vm294, %v998, 0
    %v1003 = vsel %vm294, %v1000, 0
    %1005 = vmatpush.xpose.msra.mxu0 0.0
    %1006 = vmatpush.xpose.msra.mxu0 0.0
    %1007 = vmatpush.xpose.msra.mxu0 0.0
    %1008 = vmatpush.xpose.msra.mxu0 0.0
    %1009 = vmatpush.xpose.msra.mxu0 0.0
    %1010 = vmatpush.xpose.msra.mxu0 0.0
    %1011 = vmatpush.xpose.msra.mxu0 0.0
    %1012 = vmatpush.xpose.msra.mxu0 0.0
    %1013 = vmatpush.xpose.msra.mxu0 0.0
    %1014 = vmatpush.xpose.msra.mxu0 0.0
    %1015 = vmatpush.xpose.msra.mxu0 0.0
    %1016 = vmatpush.xpose.msra.mxu0 0.0
    %1017 = vmatpush.xpose.msra.mxu0 0.0
    %1018 = vmatpush.xpose.msra.mxu0 0.0
    %1019 = vmatpush.xpose.msra.mxu0 0.0
    %1020 = vmatpush.xpose.msra.mxu0 %v1003
    %1021 = vmatmul.f32.gmra.mxu0 %v1001
    %v1022 = vpop.f32.mrf.mxu0
    %v1023 = vadd.f32 0.0, %v1022
    %1024 = vdwg.mxu0
    %v1025 = vsel %vm294, %v1023, -inf
    %1026 = vmax.xlane.f32.xlu0 %v1025
    %v1027 = vpop.xlane.xlu0 %1026
    %v1028 = vsub.f32 %v1023, %v1027
    %v1029 = vmul.f32 %v1028, 1.442695
    %v1030 = vpow.pop %v1029
    %v1031 = vsel %vm294, %v1030, 0.0
    %1032 = vadd.xlane.f32.xlu0 %v1031
    %v1033 = vpop.xlane.xlu0 %1032
    %v1034 = vrcp.pop %v1033
    %v1035 = vmul.f32 %v1033, %v1034
    %v1036 = vsub.f32 1.0, %v1035
    %v1037 = vmul.f32 %v1034, %v1036
    %v1038 = vadd.f32 %v1034, %v1037
    %vm1039 = vweird.f32 %v1033
    %vm1040 = vweird.f32 %v1034
    %vm1041 = vmor %vm1039, %vm1040
    %v1042 = vsel %vm1041, %v1034, %v1038
    %v1043 = vand.u32 2147483647, %v1033
    %vm1044 = vcmp.eq.f32.partialorder %v1043, 8.507059e+37
    %v1045 = vand.u32 %v1033, 2147483648
    %v1046 = vor.u32 1.1754944e-38, %v1045
    %v1047 = vsel %vm1044, %v1046, %v1042
    %v1048 = vmul.f32 %v1030, %v1047
    %1049 = vrot.lane.b32.xlu0 %v286, 104
    %v1050 = vpop.permute.xlu0 %1049
    %v1053 = vsel %vm294, %v1048, 0
    %1055 = vmatpush.msra.mxu0 0.0
    %1056 = vmatpush.msra.mxu0 0.0
    %1057 = vmatpush.msra.mxu0 0.0
    %1058 = vmatpush.msra.mxu0 0.0
    %1059 = vmatpush.msra.mxu0 0.0
    %1060 = vmatpush.msra.mxu0 0.0
    %1061 = vmatpush.msra.mxu0 0.0
    %1062 = vmatpush.msra.mxu0 0.0
    %1063 = vmatpush.msra.mxu0 0.0
    %1064 = vmatpush.msra.mxu0 0.0
    %1065 = vmatpush.msra.mxu0 0.0
    %1066 = vmatpush.msra.mxu0 0.0
    %1067 = vmatpush.msra.mxu0 0.0
    %1068 = vmatpush.msra.mxu0 0.0
    %1069 = vmatpush.msra.mxu0 0.0
    %1070 = vmatpush.msra.mxu0 %v1050
    %1071 = vmatmul.f32.gmra.mxu0 %v1053
    %v1072 = vpop.f32.mrf.mxu0
    %v1073 = vadd.f32 0.0, %v1072
    %1074 = vdwg.mxu0
    %v1076 = vsel %vm294, %v1073, 0
    %1078 = vmatpush.msra.mxu0 0.0
    %1079 = vmatpush.msra.mxu0 0.0
    %1080 = vmatpush.msra.mxu0 0.0
    %1081 = vmatpush.msra.mxu0 0.0
    %1082 = vmatpush.msra.mxu0 0.0
    %1083 = vmatpush.msra.mxu0 0.0
    %1084 = vmatpush.msra.mxu0 0.0
    %1085 = vmatpush.msra.mxu0 0.0
    %1086 = vmatpush.msra.mxu0 0.0
    %1087 = vmatpush.msra.mxu0 0.0
    %1088 = vmatpush.msra.mxu0 0.0
    %1089 = vmatpush.msra.mxu0 0.0
    %1090 = vmatpush.msra.mxu0 0.0
    %1091 = vmatpush.msra.mxu0 0.0
    %1092 = vmatpush.msra.mxu0 0.0
    %1093 = vmatpush.msra.mxu0 %v293
    %1094 = vmatmul.f32.gmra.mxu0 %v1076
    %v1095 = vpop.f32.mrf.mxu0
    %v1096 = vadd.f32 0.0, %v1095
    %1097 = vdwg.mxu0
    %v1098 = vadd.f32 %v996, %v1096
    %v1099 = vld [vmem:[%s8] sm:$0x1]
    %v1101 = vperm.slane %v1099, 0
    %v1103 = vadd.f32 %v696, %v1101
    %v1104 = vadd.f32 %v1098, %v1101
    %v1105 = vadd.f32 %v1103, %v123
    %v1106 = vadd.f32 %v1104, %v124
    %v1107 = vld [vmem:[%s11] sm:$0x1]
    %v1108 = vld [vmem:[%s12] sm:$0x1]
    %v1109 = vsel %vm127, %v1105, 0.0
    %1110 = vadd.xlane.f32.xlu0 %v1109
    %v1111 = vpop.xlane.xlu0 %1110
    %v1112 = vsel %vm127, %v1106, 0.0
    %1113 = vadd.xlane.f32.xlu0 %v1112
    %v1114 = vpop.xlane.xlu0 %1113
    %v1115 = vmul.f32 %v1111, %v140
    %v1116 = vmul.f32 %v1114, %v140
    %v1117 = vsub.f32 %v1105, %v1115
    %v1118 = vsub.f32 %v1106, %v1116
    %v1119 = vmul.f32 %v1117, %v1117
    %v1120 = vmul.f32 %v1118, %v1118
    %v1121 = vsel %vm127, %v1119, 0.0
    %1122 = vadd.xlane.f32.xlu0 %v1121
    %v1123 = vpop.xlane.xlu0 %1122
    %v1124 = vsel %vm127, %v1120, 0.0
    %1125 = vadd.xlane.f32.xlu0 %v1124
    %v1126 = vpop.xlane.xlu0 %1125
    %v1127 = vmul.f32 %v1123, %v140
    %v1128 = vmul.f32 %v1126, %v140
    %v1129 = vadd.f32 %v1127, 1e-05
    %v1130 = vadd.f32 %v1128, 1e-05
    %v1131 = vrsqrt.pop %v1129
    %v1132 = vmul.f32 %v1131, %v1129
    %v1133 = vmul.f32 %v1132, %v1131
    %v1134 = vmul.f32 0.5, %v1133
    %v1135 = vsub.f32 1.5, %v1134
    %v1136 = vmul.f32 %v1131, %v1135
    %vm1137 = vweird.f32 %v1129
    %vm1138 = vweird.f32 %v1131
    %vm1139 = vmor %vm1137, %vm1138
    %v1140 = vsel %vm1139, %v1131, %v1136
    %v1141 = vrsqrt.pop %v1130
    %v1142 = vmul.f32 %v1141, %v1130
    %v1143 = vmul.f32 %v1142, %v1141
    %v1144 = vmul.f32 0.5, %v1143
    %v1145 = vsub.f32 1.5, %v1144
    %v1146 = vmul.f32 %v1141, %v1145
    %vm1147 = vweird.f32 %v1130
    %vm1148 = vweird.f32 %v1141
    %vm1149 = vmor %vm1147, %vm1148
    %v1150 = vsel %vm1149, %v1141, %v1146
    %v1151 = vmul.f32 %v1117, %v1140
    %v1152 = vmul.f32 %v1118, %v1150
    %v1154 = vperm.slane %v1107, 0
    %v1156 = vmul.f32 %v1151, %v1154
    %v1157 = vmul.f32 %v1152, %v1154
    %v1159 = vperm.slane %v1108, 0
    %v1161 = vadd.f32 %v1156, %v1159
    %v1162 = vadd.f32 %v1157, %v1159
    %1163 = vst.msk [vmem:[#allocation11] sm:$0xff] %vm127, %v1161
    %1164 = vst.msk [vmem:[#allocation11 + $0x8] sm:$0xff] %vm127, %v1162
    // Predicated region
    $region74: #{tpu_custom_call.1} parent=1 // pred_check
      _
    $region75: #{tpu_custom_call.1} parent=1 // pred_check_branch
      %1166 = sbr.rel (0) target = $region77
    $region76: #{tpu_custom_call.1} parent=1 // pred_region
      %1168 = vsyncadd [#allocation4], 0
      %s1169 = sshll.u32 [#allocation11], 4
      %s1170 = int_to_ptr.vmem [resolvable:$true] %s1169
      %s1171 = sshll.u32 %s13, 4
      %s1172 = int_to_ptr.hbm [resolvable:$true] %s1171
      %1177 = dma.vmem_to_hbm [thread:$0]  %s1170, 256, %s1172, [#allocation4], 128, 128, 8
    $region77: #{tpu_custom_call.1} parent=1 // pred_fallthru
      _
    // Predicated region
    $region78: #{tpu_custom_call.1} parent=1 // pred_check
      _
    $region79: #{tpu_custom_call.1} parent=1 // pred_check_branch
      %1179 = sbr.rel (0) target = $region81
    $region80: #{tpu_custom_call.1} parent=1 // pred_region
      %1181 = dma.done [#allocation4], 256
    $region81: #{tpu_custom_call.1} parent=1 // pred_fallthru
      _
    %1182 = vsyncpa [#allocation3], 1
    %1183 = vsyncpa [#allocation6], 1
    %1184 = vsyncpa [#allocation9], 1
    %1185 = vsyncpa [#allocation4], 1

</llo_original>
